<compile_context>
chip_gen: v7x
topology: tpu7x:2x2x1
jax: 0.10.0
libtpu: 0.0.40
codegen_flags: <defaults>
</compile_context>

<pallas_src>
import numpy as np

import jax
import jax.numpy as jnp
from jax.experimental import pallas as pl
from jax.experimental.pallas import tpu as pltpu

NEG_SLOPE = 0.01
BN_EPS = 1e-5


# --------------------------- layout helpers --------------------------------- #

def _margin_dims(h, w):
    """Dims of the zero-'margin' flat layout used for activations in the kernel.

    A (h, w) activation is stored as (C, wfull): column m0 + hp*wp + wc holds
    the zero-padded image value at padded coords (hp, wc).  The first and last
    m0 columns are an extra zero margin so every 3x3 tap is a plain in-bounds
    static slice of the flat buffer.
    """
    wp = w + 2                    # padded width
    l = (h + 2) * wp              # flattened padded-image length
    m0 = wp + 1                   # tap offsets span [-(wp+1), wp+1]
    return wp, l, m0, 2 * m0 + l


def _ring_mask(h, w):
    """(1, l) f32 0/1 mask: 1 at interior pixels of the padded-flat layout."""
    wp, l, _, _ = _margin_dims(h, w)
    m = np.zeros((1, l), np.float32)
    for i in range(h):
        for j in range(w):
            m[0, (i + 1) * wp + (j + 1)] = 1.0
    return m


def _pool_scatter_matrix(h, w):
    """(l-1-wp, wfull_next) 0/1: 2x2-max candidates -> margin layout at h/2 x w/2."""
    wp, l, _, _ = _margin_dims(h, w)
    ho, wo = h // 2, w // 2
    wp2, _, m02, wfull2 = _margin_dims(ho, wo)
    s = np.zeros((l - 1 - wp, wfull2), np.float32)
    for i in range(ho):
        for j in range(wo):
            q = (2 * i + 1) * wp + (2 * j + 1)          # top-left of 2x2 block
            s[q, m02 + (i + 1) * wp2 + (j + 1)] = 1.0
    return s


# ------------------------------ fused kernel -------------------------------- #

def _encoder_kernel(x_ref,
                    w0, s0, w1, s1, w2, s2, w3, s3, w4, s4, w5, s5,
                    m16, m8, m4, p16, p8,
                    skip0_ref, sko_ref):
    """Whole-encoder forward for ONE image; everything stays VMEM resident."""
    f32 = jnp.float32
    bf16 = jnp.bfloat16

    def conv3x3(x_m, w_ref, shift_ref, hw):
        # x_m: (Cin, wfull) bf16 margin-layout activation (zero ring + margins).
        # Fused-K conv: one MXU dot with K = 9*Cin instead of 9 taps.
        wp, l, m0, _ = _margin_dims(hw, hw)
        taps = []
        for kh in range(3):
            for kw in range(3):
                d = (kh - 1) * wp + (kw - 1)
                taps.append(x_m[:, m0 + d:m0 + d + l])       # (Cin, l) bf16
        x9 = jnp.concatenate(taps, axis=0)                    # (9*Cin, l) bf16
        y = jnp.dot(w_ref[...], x9, preferred_element_type=f32)
        y = y + shift_ref[...]                                # fused bias + BN
        return jnp.where(y >= 0, y, NEG_SLOPE * y)            # (Cout, l) f32

    def remargin(y, mask_ref, hw):
        # Zero the padded ring (VPU) and re-embed into the margin layout (bf16).
        _, _, m0, _ = _margin_dims(hw, hw)
        ym = (y * mask_ref[...]).astype(bf16)                 # (Cout, l)
        z = jnp.zeros((y.shape[0], m0), bf16)
        return jnp.concatenate([z, ym, z], axis=1)            # (Cout, wfull)

    def maxpool_to_margin(y, hw, p_ref):
        # y: (C, l) padded-flat stage output -> next-resolution margin layout.
        wp = hw + 2
        l = y.shape[1]
        m1 = jnp.maximum(y[:, :l - 1], y[:, 1:])              # horizontal pairs
        m2 = jnp.maximum(m1[:, :l - 1 - wp], m1[:, wp:])      # + vertical pairs
        # exact 0/1 gather+scatter on the MXU (bf16 x bf16 -> f32)
        return jnp.dot(m2.astype(bf16), p_ref[...],
                       preferred_element_type=f32).astype(bf16)

    # ---- stage 0 @ 16x16 ----
    a = x_ref[0]                            # (8, 362) bf16 margin layout
    y = conv3x3(a, w0, s0, 16)
    a = remargin(y, m16, 16)
    y = conv3x3(a, w1, s1, 16)
    skip0_ref[0] = y                        # (8, 324) f32, padded-flat, lane-dense

    # ---- pool -> stage 1 @ 8x8 ----
    a = maxpool_to_margin(y, 16, p16)
    y = conv3x3(a, w2, s2, 8)
    a = remargin(y, m8, 8)
    y = conv3x3(a, w3, s3, 8)
    skip1 = y                               # (16, 100) f32, padded-flat

    # ---- pool -> bottleneck @ 4x4 ----
    a = maxpool_to_margin(y, 8, p8)
    y = conv3x3(a, w4, s4, 4)
    a = remargin(y, m4, 4)
    y = conv3x3(a, w5, s5, 4)               # (16, 36) f32, padded-flat

    # pack skip1 ++ bottleneck into one >=128-lane output buffer
    sko_ref[0] = jnp.concatenate([skip1, y], axis=1)          # (16, 136) f32


# --------------------------- parameter creation ----------------------------- #

def _conv_block_params(key, cin, cout):
    """Params of one ConvDropoutNormNonlin: Conv2d(3x3, bias) + BatchNorm2d."""
    k = jax.random.split(key, 5)
    fan_in = cin * 9
    w = jax.random.normal(k[0], (cout, cin, 3, 3), jnp.float32) * jnp.sqrt(2.0 / fan_in)
    bias = jnp.zeros((cout,), jnp.float32)                 # InitWeights_He -> bias 0
    gamma = 1.0 + 0.1 * jax.random.normal(k[1], (cout,), jnp.float32)
    beta = 0.1 * jax.random.normal(k[2], (cout,), jnp.float32)
    r_mean = 0.1 * jax.random.normal(k[3], (cout,), jnp.float32)
    r_var = 0.5 + jax.random.uniform(k[4], (cout,), jnp.float32)
    return (w, bias, gamma, beta, r_mean, r_var)


def init_encoder_params(key, input_channels=4, base_num_features=8, num_pool=2,
                        num_conv_per_stage=2, feat_mul=2, max_num_features=480):
    params = {"stages": [], "bottleneck": []}
    in_f, out_f = input_channels, base_num_features
    for _ in range(num_pool):
        stage = []
        cin = in_f
        for _ in range(num_conv_per_stage):
            key, sub = jax.random.split(key)
            stage.append(_conv_block_params(sub, cin, out_f))
            cin = out_f
        params["stages"].append(stage)
        in_f = out_f
        out_f = min(int(round(out_f * feat_mul)), max_num_features)
    # bottleneck: (num_conv_per_stage - 1) convs in_f->out_f, then 1 conv out_f->final
    final_f = in_f                      # convolutional_upsampling=False
    cin = in_f
    for _ in range(num_conv_per_stage - 1):
        key, sub = jax.random.split(key)
        params["bottleneck"].append(_conv_block_params(sub, cin, out_f))
        cin = out_f
    key, sub = jax.random.split(key)
    params["bottleneck"].append(_conv_block_params(sub, cin, final_f))
    return params


def prepare_encoder_inputs(params):
    """Fold conv bias + eval-mode BN into packed (Cout, 9*Cin) bf16 weights and
    a (Cout, 1) f32 shift; build the tiny ring-mask / pool-scatter constants."""
    layers = params["stages"][0] + params["stages"][1] + params["bottleneck"]
    assert len(layers) == 6
    packed = []
    for idx, (w, bias, gamma, beta, mean, var) in enumerate(layers):
        inv = gamma / jnp.sqrt(var + BN_EPS)                  # (Cout,)
        wf = w * inv[:, None, None, None]                     # (Cout, Cin, 3, 3)
        if idx == 0:                       # pad input channels 4 -> 8
            pad_c = max(0, 8 - wf.shape[1])
            wf = jnp.pad(wf, ((0, 0), (0, pad_c), (0, 0), (0, 0)))
        # pack to (Cout, 9*Cin), tap-major / cin-minor, matching the in-kernel
        # concat order of the 9 shifted slices.
        wf = jnp.transpose(wf, (0, 2, 3, 1)).reshape(wf.shape[0], -1)
        shift = ((bias - mean) * inv + beta).reshape(-1, 1)   # (Cout, 1)
        packed += [wf.astype(jnp.bfloat16), shift.astype(jnp.float32)]
    consts = [
        jnp.asarray(_ring_mask(16, 16), jnp.float32),                # m16 (1, 324)
        jnp.asarray(_ring_mask(8, 8), jnp.float32),                  # m8  (1, 100)
        jnp.asarray(_ring_mask(4, 4), jnp.float32),                  # m4  (1, 36)
        jnp.asarray(_pool_scatter_matrix(16, 16), jnp.bfloat16),     # p16 (305, 122)
        jnp.asarray(_pool_scatter_matrix(8, 8), jnp.bfloat16),       # p8  (89, 50)
    ]
    return tuple(packed + consts)


# ------------------------------ encoder forward ----------------------------- #

def encoder_forward(x_nchw, prepared):
    N, C, H, W = x_nchw.shape
    assert C == 4 and H == 16 and W == 16, "kernel specialized for 4ch 16x16 input"
    wp, l, m0, wfull = _margin_dims(H, W)          # 18, 324, 19, 362

    # Build the margin-layout input in the wrapper (pure pad/reshape, no MXU):
    # channels 4->8, spatial zero ring, flatten, lane margins, cast to bf16.
    x = jnp.pad(x_nchw.astype(jnp.float32),
                ((0, 0), (0, 8 - C), (1, 1), (1, 1)))          # (N, 8, 18, 18)
    x = x.reshape(N, 8, l)
    x = jnp.pad(x, ((0, 0), (0, 0), (m0, m0))).astype(jnp.bfloat16)   # (N, 8, 362)

    out_shapes = (
        jax.ShapeDtypeStruct((N, 8, 324), jnp.float32),    # skip0, padded-flat
        jax.ShapeDtypeStruct((N, 16, 136), jnp.float32),   # skip1 (100) ++ out (36)
    )
    in_specs = [pl.BlockSpec((1, 8, wfull), lambda n: (n, 0, 0))]
    for arr in prepared:                                    # weights/shifts/constants
        in_specs.append(pl.BlockSpec(arr.shape, lambda n, nd=arr.ndim: (0,) * nd))
    out_specs = (
        pl.BlockSpec((1, 8, 324), lambda n: (n, 0, 0)),
        pl.BlockSpec((1, 16, 136), lambda n: (n, 0, 0)),
    )

    skip0p, sko = pl.pallas_call(
        _encoder_kernel,
        out_shape=out_shapes,
        grid=(N,),
        in_specs=in_specs,
        out_specs=out_specs,
        compiler_params=pltpu.CompilerParams(
            dimension_semantics=("parallel",)),             # 2 TCs on v7x
    )(x, *prepared)

    # 1-pixel border crop (padded-flat -> NCHW) done in the wrapper: pure
    # reshape + static slice, no kernel-side permutation matmuls.
    skip0 = skip0p.reshape(N, 8, 18, 18)[:, :, 1:-1, 1:-1]             # (N, 8, 16, 16)
    skip1 = sko[:, :, :100].reshape(N, 16, 10, 10)[:, :, 1:-1, 1:-1]   # (N, 16, 8, 8)
    out = sko[:, :, 100:].reshape(N, 16, 6, 6)[:, :, 1:-1, 1:-1]       # (N, 16, 4, 4)
    return out, [skip0, skip1]


# ----------------------------------- main ----------------------------------- #

if __name__ == "__main__":
    key = jax.random.PRNGKey(0)
    kx, kp = jax.random.split(key)

    # batch=2, 4 input modalities, 16x16 spatial (NCHW, like PyTorch)
    x = jax.random.normal(kx, (2, 4, 16, 16), jnp.float32)

    params = init_encoder_params(kp, input_channels=4, base_num_features=8,
                                 num_pool=2, num_conv_per_stage=2)
    prepared = prepare_encoder_inputs(params)

    fwd = jax.jit(encoder_forward)
    out, skips = fwd(x, prepared)
    jax.block_until_ready(out)
    for s in skips:
        jax.block_until_ready(s)

    # shapes implied by the module (final_num_features = 16)
    assert out.shape == (2, 16, 4, 4), out.shape
    assert skips[0].shape == (2, 8, 16, 16), skips[0].shape
    assert skips[1].shape == (2, 16, 8, 8), skips[1].shape

    # TODO(synk): training-mode Dropout2d(p=0.5)/batch-stat BatchNorm are stochastic;
    # this kernel implements the deterministic inference-mode forward.
    print("KERNEL_OK")
</pallas_src>

<mosaic_0001>
module attributes {stable_mosaic.version = 11 : i64} {
  func.func @_encoder_kernel(%arg0: i32, %arg1: memref<1x8x362xbf16, #tpu.memory_space<vmem>>, %arg2: memref<8x72xbf16, #tpu.memory_space<vmem>>, %arg3: memref<8x1xf32, #tpu.memory_space<vmem>>, %arg4: memref<8x72xbf16, #tpu.memory_space<vmem>>, %arg5: memref<8x1xf32, #tpu.memory_space<vmem>>, %arg6: memref<16x72xbf16, #tpu.memory_space<vmem>>, %arg7: memref<16x1xf32, #tpu.memory_space<vmem>>, %arg8: memref<16x144xbf16, #tpu.memory_space<vmem>>, %arg9: memref<16x1xf32, #tpu.memory_space<vmem>>, %arg10: memref<32x144xbf16, #tpu.memory_space<vmem>>, %arg11: memref<32x1xf32, #tpu.memory_space<vmem>>, %arg12: memref<16x288xbf16, #tpu.memory_space<vmem>>, %arg13: memref<16x1xf32, #tpu.memory_space<vmem>>, %arg14: memref<1x324xf32, #tpu.memory_space<vmem>>, %arg15: memref<1x100xf32, #tpu.memory_space<vmem>>, %arg16: memref<1x36xf32, #tpu.memory_space<vmem>>, %arg17: memref<305x122xbf16, #tpu.memory_space<vmem>>, %arg18: memref<89x50xbf16, #tpu.memory_space<vmem>>, %arg19: memref<1x8x324xf32, #tpu.memory_space<vmem>>, %arg20: memref<1x16x136xf32, #tpu.memory_space<vmem>>) attributes {dimension_semantics = [#tpu.dimension_semantics<parallel>], iteration_bounds = array<i64: 2>, scalar_prefetch = 0 : i64, scratch_operands = 0 : i64, tpu.core_type = #tpu.core_type<tc>, window_params = [{transform_indices = @transform_0, window_bounds = array<i64: 1, 8, 362>}, {pipeline_mode = #tpu.pipeline_mode<synchronous>, transform_indices = @transform_1, window_bounds = array<i64: 8, 72>}, {pipeline_mode = #tpu.pipeline_mode<synchronous>, transform_indices = @transform_2, window_bounds = array<i64: 8, 1>}, {pipeline_mode = #tpu.pipeline_mode<synchronous>, transform_indices = @transform_3, window_bounds = array<i64: 8, 72>}, {pipeline_mode = #tpu.pipeline_mode<synchronous>, transform_indices = @transform_4, window_bounds = array<i64: 8, 1>}, {pipeline_mode = #tpu.pipeline_mode<synchronous>, transform_indices = @transform_5, window_bounds = array<i64: 16, 72>}, {pipeline_mode = #tpu.pipeline_mode<synchronous>, transform_indices = @transform_6, window_bounds = array<i64: 16, 1>}, {pipeline_mode = #tpu.pipeline_mode<synchronous>, transform_indices = @transform_7, window_bounds = array<i64: 16, 144>}, {pipeline_mode = #tpu.pipeline_mode<synchronous>, transform_indices = @transform_8, window_bounds = array<i64: 16, 1>}, {pipeline_mode = #tpu.pipeline_mode<synchronous>, transform_indices = @transform_9, window_bounds = array<i64: 32, 144>}, {pipeline_mode = #tpu.pipeline_mode<synchronous>, transform_indices = @transform_10, window_bounds = array<i64: 32, 1>}, {pipeline_mode = #tpu.pipeline_mode<synchronous>, transform_indices = @transform_11, window_bounds = array<i64: 16, 288>}, {pipeline_mode = #tpu.pipeline_mode<synchronous>, transform_indices = @transform_12, window_bounds = array<i64: 16, 1>}, {pipeline_mode = #tpu.pipeline_mode<synchronous>, transform_indices = @transform_13, window_bounds = array<i64: 1, 324>}, {pipeline_mode = #tpu.pipeline_mode<synchronous>, transform_indices = @transform_14, window_bounds = array<i64: 1, 100>}, {pipeline_mode = #tpu.pipeline_mode<synchronous>, transform_indices = @transform_15, window_bounds = array<i64: 1, 36>}, {pipeline_mode = #tpu.pipeline_mode<synchronous>, transform_indices = @transform_16, window_bounds = array<i64: 305, 122>}, {pipeline_mode = #tpu.pipeline_mode<synchronous>, transform_indices = @transform_17, window_bounds = array<i64: 89, 50>}, {transform_indices = @transform_18, window_bounds = array<i64: 1, 8, 324>}, {transform_indices = @transform_19, window_bounds = array<i64: 1, 16, 136>}]} {
    %c0 = arith.constant 0 : index
    %c0_0 = arith.constant 0 : index
    %c0_1 = arith.constant 0 : index
    %0 = vector.load %arg1[%c0, %c0_0, %c0_1] : memref<1x8x362xbf16, #tpu.memory_space<vmem>>, vector<1x8x362xbf16>
    %1 = vector.shape_cast %0 : vector<1x8x362xbf16> to vector<8x362xbf16>
    %2 = vector.extract_strided_slice %1 {offsets = [0, 0], sizes = [8, 324], strides = [1, 1]} : vector<8x362xbf16> to vector<8x324xbf16>
    %3 = vector.extract_strided_slice %1 {offsets = [0, 1], sizes = [8, 324], strides = [1, 1]} : vector<8x362xbf16> to vector<8x324xbf16>
    %4 = vector.extract_strided_slice %1 {offsets = [0, 2], sizes = [8, 324], strides = [1, 1]} : vector<8x362xbf16> to vector<8x324xbf16>
    %5 = vector.extract_strided_slice %1 {offsets = [0, 18], sizes = [8, 324], strides = [1, 1]} : vector<8x362xbf16> to vector<8x324xbf16>
    %6 = vector.extract_strided_slice %1 {offsets = [0, 19], sizes = [8, 324], strides = [1, 1]} : vector<8x362xbf16> to vector<8x324xbf16>
    %7 = vector.extract_strided_slice %1 {offsets = [0, 20], sizes = [8, 324], strides = [1, 1]} : vector<8x362xbf16> to vector<8x324xbf16>
    %8 = vector.extract_strided_slice %1 {offsets = [0, 36], sizes = [8, 324], strides = [1, 1]} : vector<8x362xbf16> to vector<8x324xbf16>
    %9 = vector.extract_strided_slice %1 {offsets = [0, 37], sizes = [8, 324], strides = [1, 1]} : vector<8x362xbf16> to vector<8x324xbf16>
    %10 = vector.extract_strided_slice %1 {offsets = [0, 38], sizes = [8, 324], strides = [1, 1]} : vector<8x362xbf16> to vector<8x324xbf16>
    %11 = tpu.concatenate %2, %3, %4, %5, %6, %7, %8, %9, %10 in 0 : vector<8x324xbf16>, vector<8x324xbf16>, vector<8x324xbf16>, vector<8x324xbf16>, vector<8x324xbf16>, vector<8x324xbf16>, vector<8x324xbf16>, vector<8x324xbf16>, vector<8x324xbf16> -> vector<72x324xbf16>
    %c0_2 = arith.constant 0 : index
    %c0_3 = arith.constant 0 : index
    %12 = vector.load %arg2[%c0_2, %c0_3] : memref<8x72xbf16, #tpu.memory_space<vmem>>, vector<8x72xbf16>
    %cst = arith.constant dense<0.000000e+00> : vector<8x324xf32>
    %13 = tpu.matmul %12, %11, %cst {dimension_numbers = #tpu.dot_dimension_numbers<[1], [0], [0], [1], [0, 0, 1, 1], [], []>} : vector<8x72xbf16>, vector<72x324xbf16>, vector<8x324xf32> -> vector<8x324xf32>
    %c0_4 = arith.constant 0 : index
    %c0_5 = arith.constant 0 : index
    %14 = vector.load %arg3[%c0_4, %c0_5] : memref<8x1xf32, #tpu.memory_space<vmem>>, vector<8x1xf32>
    %15 = vector.broadcast %14 : vector<8x1xf32> to vector<8x324xf32>
    %16 = arith.addf %13, %15 : vector<8x324xf32>
    %cst_6 = arith.constant 0.000000e+00 : f32
    %17 = vector.broadcast %cst_6 : f32 to vector<8x324xf32>
    %18 = arith.cmpf oge, %16, %17 : vector<8x324xf32>
    %cst_7 = arith.constant 0.00999999977 : f32
    %19 = vector.broadcast %cst_7 : f32 to vector<8x324xf32>
    %20 = arith.mulf %19, %16 : vector<8x324xf32>
    %21 = arith.select %18, %16, %20 : vector<8x324xi1>, vector<8x324xf32>
    %c0_8 = arith.constant 0 : index
    %c0_9 = arith.constant 0 : index
    %22 = vector.load %arg14[%c0_8, %c0_9] : memref<1x324xf32, #tpu.memory_space<vmem>>, vector<1x324xf32>
    %23 = vector.broadcast %22 : vector<1x324xf32> to vector<8x324xf32>
    %24 = arith.mulf %21, %23 : vector<8x324xf32>
    %25 = arith.truncf %24 : vector<8x324xf32> to vector<8x324xbf16>
    %cst_10 = arith.constant 0.000000e+00 : bf16
    %26 = vector.broadcast %cst_10 : bf16 to vector<8x19xbf16>
    %27 = tpu.concatenate %26, %25, %26 in 1 : vector<8x19xbf16>, vector<8x324xbf16>, vector<8x19xbf16> -> vector<8x362xbf16>
    %28 = vector.extract_strided_slice %27 {offsets = [0, 0], sizes = [8, 324], strides = [1, 1]} : vector<8x362xbf16> to vector<8x324xbf16>
    %29 = vector.extract_strided_slice %27 {offsets = [0, 1], sizes = [8, 324], strides = [1, 1]} : vector<8x362xbf16> to vector<8x324xbf16>
    %30 = vector.extract_strided_slice %27 {offsets = [0, 2], sizes = [8, 324], strides = [1, 1]} : vector<8x362xbf16> to vector<8x324xbf16>
    %31 = vector.extract_strided_slice %27 {offsets = [0, 18], sizes = [8, 324], strides = [1, 1]} : vector<8x362xbf16> to vector<8x324xbf16>
    %32 = vector.extract_strided_slice %27 {offsets = [0, 19], sizes = [8, 324], strides = [1, 1]} : vector<8x362xbf16> to vector<8x324xbf16>
    %33 = vector.extract_strided_slice %27 {offsets = [0, 20], sizes = [8, 324], strides = [1, 1]} : vector<8x362xbf16> to vector<8x324xbf16>
    %34 = vector.extract_strided_slice %27 {offsets = [0, 36], sizes = [8, 324], strides = [1, 1]} : vector<8x362xbf16> to vector<8x324xbf16>
    %35 = vector.extract_strided_slice %27 {offsets = [0, 37], sizes = [8, 324], strides = [1, 1]} : vector<8x362xbf16> to vector<8x324xbf16>
    %36 = vector.extract_strided_slice %27 {offsets = [0, 38], sizes = [8, 324], strides = [1, 1]} : vector<8x362xbf16> to vector<8x324xbf16>
    %37 = tpu.concatenate %28, %29, %30, %31, %32, %33, %34, %35, %36 in 0 : vector<8x324xbf16>, vector<8x324xbf16>, vector<8x324xbf16>, vector<8x324xbf16>, vector<8x324xbf16>, vector<8x324xbf16>, vector<8x324xbf16>, vector<8x324xbf16>, vector<8x324xbf16> -> vector<72x324xbf16>
    %c0_11 = arith.constant 0 : index
    %c0_12 = arith.constant 0 : index
    %38 = vector.load %arg4[%c0_11, %c0_12] : memref<8x72xbf16, #tpu.memory_space<vmem>>, vector<8x72xbf16>
    %cst_13 = arith.constant dense<0.000000e+00> : vector<8x324xf32>
    %39 = tpu.matmul %38, %37, %cst_13 {dimension_numbers = #tpu.dot_dimension_numbers<[1], [0], [0], [1], [0, 0, 1, 1], [], []>} : vector<8x72xbf16>, vector<72x324xbf16>, vector<8x324xf32> -> vector<8x324xf32>
    %c0_14 = arith.constant 0 : index
    %c0_15 = arith.constant 0 : index
    %40 = vector.load %arg5[%c0_14, %c0_15] : memref<8x1xf32, #tpu.memory_space<vmem>>, vector<8x1xf32>
    %41 = vector.broadcast %40 : vector<8x1xf32> to vector<8x324xf32>
    %42 = arith.addf %39, %41 : vector<8x324xf32>
    %cst_16 = arith.constant 0.000000e+00 : f32
    %43 = vector.broadcast %cst_16 : f32 to vector<8x324xf32>
    %44 = arith.cmpf oge, %42, %43 : vector<8x324xf32>
    %cst_17 = arith.constant 0.00999999977 : f32
    %45 = vector.broadcast %cst_17 : f32 to vector<8x324xf32>
    %46 = arith.mulf %45, %42 : vector<8x324xf32>
    %47 = arith.select %44, %42, %46 : vector<8x324xi1>, vector<8x324xf32>
    %c0_18 = arith.constant 0 : index
    %c0_19 = arith.constant 0 : index
    %c0_20 = arith.constant 0 : index
    %48 = vector.load %arg19[%c0_18, %c0_19, %c0_20] : memref<1x8x324xf32, #tpu.memory_space<vmem>>, vector<1x8x324xf32>
    %49 = vector.shape_cast %48 : vector<1x8x324xf32> to vector<8x324xf32>
    %50 = vector.shape_cast %47 : vector<8x324xf32> to vector<1x8x324xf32>
    tpu.vector_store %arg19[%c0_18, %c0_19, %c0_20], %50 {strides = array<i32>} : memref<1x8x324xf32, #tpu.memory_space<vmem>>, vector<1x8x324xf32>,
    %51 = vector.extract_strided_slice %47 {offsets = [0, 0], sizes = [8, 323], strides = [1, 1]} : vector<8x324xf32> to vector<8x323xf32>
    %52 = vector.extract_strided_slice %47 {offsets = [0, 1], sizes = [8, 323], strides = [1, 1]} : vector<8x324xf32> to vector<8x323xf32>
    %53 = arith.maximumf %51, %52 : vector<8x323xf32>
    %54 = vector.extract_strided_slice %53 {offsets = [0, 0], sizes = [8, 305], strides = [1, 1]} : vector<8x323xf32> to vector<8x305xf32>
    %55 = vector.extract_strided_slice %53 {offsets = [0, 18], sizes = [8, 305], strides = [1, 1]} : vector<8x323xf32> to vector<8x305xf32>
    %56 = arith.maximumf %54, %55 : vector<8x305xf32>
    %57 = arith.truncf %56 : vector<8x305xf32> to vector<8x305xbf16>
    %c0_21 = arith.constant 0 : index
    %c0_22 = arith.constant 0 : index
    %58 = vector.load %arg17[%c0_21, %c0_22] : memref<305x122xbf16, #tpu.memory_space<vmem>>, vector<305x122xbf16>
    %cst_23 = arith.constant dense<0.000000e+00> : vector<8x122xf32>
    %59 = tpu.matmul %57, %58, %cst_23 {dimension_numbers = #tpu.dot_dimension_numbers<[1], [0], [0], [1], [0, 0, 1, 1], [], []>} : vector<8x305xbf16>, vector<305x122xbf16>, vector<8x122xf32> -> vector<8x122xf32>
    %60 = arith.truncf %59 : vector<8x122xf32> to vector<8x122xbf16>
    %61 = vector.extract_strided_slice %60 {offsets = [0, 0], sizes = [8, 100], strides = [1, 1]} : vector<8x122xbf16> to vector<8x100xbf16>
    %62 = vector.extract_strided_slice %60 {offsets = [0, 1], sizes = [8, 100], strides = [1, 1]} : vector<8x122xbf16> to vector<8x100xbf16>
    %63 = vector.extract_strided_slice %60 {offsets = [0, 2], sizes = [8, 100], strides = [1, 1]} : vector<8x122xbf16> to vector<8x100xbf16>
    %64 = vector.extract_strided_slice %60 {offsets = [0, 10], sizes = [8, 100], strides = [1, 1]} : vector<8x122xbf16> to vector<8x100xbf16>
    %65 = vector.extract_strided_slice %60 {offsets = [0, 11], sizes = [8, 100], strides = [1, 1]} : vector<8x122xbf16> to vector<8x100xbf16>
    %66 = vector.extract_strided_slice %60 {offsets = [0, 12], sizes = [8, 100], strides = [1, 1]} : vector<8x122xbf16> to vector<8x100xbf16>
    %67 = vector.extract_strided_slice %60 {offsets = [0, 20], sizes = [8, 100], strides = [1, 1]} : vector<8x122xbf16> to vector<8x100xbf16>
    %68 = vector.extract_strided_slice %60 {offsets = [0, 21], sizes = [8, 100], strides = [1, 1]} : vector<8x122xbf16> to vector<8x100xbf16>
    %69 = vector.extract_strided_slice %60 {offsets = [0, 22], sizes = [8, 100], strides = [1, 1]} : vector<8x122xbf16> to vector<8x100xbf16>
    %70 = tpu.concatenate %61, %62, %63, %64, %65, %66, %67, %68, %69 in 0 : vector<8x100xbf16>, vector<8x100xbf16>, vector<8x100xbf16>, vector<8x100xbf16>, vector<8x100xbf16>, vector<8x100xbf16>, vector<8x100xbf16>, vector<8x100xbf16>, vector<8x100xbf16> -> vector<72x100xbf16>
    %c0_24 = arith.constant 0 : index
    %c0_25 = arith.constant 0 : index
    %71 = vector.load %arg6[%c0_24, %c0_25] : memref<16x72xbf16, #tpu.memory_space<vmem>>, vector<16x72xbf16>
    %cst_26 = arith.constant dense<0.000000e+00> : vector<16x100xf32>
    %72 = tpu.matmul %71, %70, %cst_26 {dimension_numbers = #tpu.dot_dimension_numbers<[1], [0], [0], [1], [0, 0, 1, 1], [], []>} : vector<16x72xbf16>, vector<72x100xbf16>, vector<16x100xf32> -> vector<16x100xf32>
    %c0_27 = arith.constant 0 : index
    %c0_28 = arith.constant 0 : index
    %73 = vector.load %arg7[%c0_27, %c0_28] : memref<16x1xf32, #tpu.memory_space<vmem>>, vector<16x1xf32>
    %74 = vector.broadcast %73 : vector<16x1xf32> to vector<16x100xf32>
    %75 = arith.addf %72, %74 : vector<16x100xf32>
    %cst_29 = arith.constant 0.000000e+00 : f32
    %76 = vector.broadcast %cst_29 : f32 to vector<16x100xf32>
    %77 = arith.cmpf oge, %75, %76 : vector<16x100xf32>
    %cst_30 = arith.constant 0.00999999977 : f32
    %78 = vector.broadcast %cst_30 : f32 to vector<16x100xf32>
    %79 = arith.mulf %78, %75 : vector<16x100xf32>
    %80 = arith.select %77, %75, %79 : vector<16x100xi1>, vector<16x100xf32>
    %c0_31 = arith.constant 0 : index
    %c0_32 = arith.constant 0 : index
    %81 = vector.load %arg15[%c0_31, %c0_32] : memref<1x100xf32, #tpu.memory_space<vmem>>, vector<1x100xf32>
    %82 = vector.broadcast %81 : vector<1x100xf32> to vector<16x100xf32>
    %83 = arith.mulf %80, %82 : vector<16x100xf32>
    %84 = arith.truncf %83 : vector<16x100xf32> to vector<16x100xbf16>
    %cst_33 = arith.constant 0.000000e+00 : bf16
    %85 = vector.broadcast %cst_33 : bf16 to vector<16x11xbf16>
    %86 = tpu.concatenate %85, %84, %85 in 1 : vector<16x11xbf16>, vector<16x100xbf16>, vector<16x11xbf16> -> vector<16x122xbf16>
    %87 = vector.extract_strided_slice %86 {offsets = [0, 0], sizes = [16, 100], strides = [1, 1]} : vector<16x122xbf16> to vector<16x100xbf16>
    %88 = vector.extract_strided_slice %86 {offsets = [0, 1], sizes = [16, 100], strides = [1, 1]} : vector<16x122xbf16> to vector<16x100xbf16>
    %89 = vector.extract_strided_slice %86 {offsets = [0, 2], sizes = [16, 100], strides = [1, 1]} : vector<16x122xbf16> to vector<16x100xbf16>
    %90 = vector.extract_strided_slice %86 {offsets = [0, 10], sizes = [16, 100], strides = [1, 1]} : vector<16x122xbf16> to vector<16x100xbf16>
    %91 = vector.extract_strided_slice %86 {offsets = [0, 11], sizes = [16, 100], strides = [1, 1]} : vector<16x122xbf16> to vector<16x100xbf16>
    %92 = vector.extract_strided_slice %86 {offsets = [0, 12], sizes = [16, 100], strides = [1, 1]} : vector<16x122xbf16> to vector<16x100xbf16>
    %93 = vector.extract_strided_slice %86 {offsets = [0, 20], sizes = [16, 100], strides = [1, 1]} : vector<16x122xbf16> to vector<16x100xbf16>
    %94 = vector.extract_strided_slice %86 {offsets = [0, 21], sizes = [16, 100], strides = [1, 1]} : vector<16x122xbf16> to vector<16x100xbf16>
    %95 = vector.extract_strided_slice %86 {offsets = [0, 22], sizes = [16, 100], strides = [1, 1]} : vector<16x122xbf16> to vector<16x100xbf16>
    %96 = tpu.concatenate %87, %88, %89, %90, %91, %92, %93, %94, %95 in 0 : vector<16x100xbf16>, vector<16x100xbf16>, vector<16x100xbf16>, vector<16x100xbf16>, vector<16x100xbf16>, vector<16x100xbf16>, vector<16x100xbf16>, vector<16x100xbf16>, vector<16x100xbf16> -> vector<144x100xbf16>
    %c0_34 = arith.constant 0 : index
    %c0_35 = arith.constant 0 : index
    %97 = vector.load %arg8[%c0_34, %c0_35] : memref<16x144xbf16, #tpu.memory_space<vmem>>, vector<16x144xbf16>
    %cst_36 = arith.constant dense<0.000000e+00> : vector<16x100xf32>
    %98 = tpu.matmul %97, %96, %cst_36 {dimension_numbers = #tpu.dot_dimension_numbers<[1], [0], [0], [1], [0, 0, 1, 1], [], []>} : vector<16x144xbf16>, vector<144x100xbf16>, vector<16x100xf32> -> vector<16x100xf32>
    %c0_37 = arith.constant 0 : index
    %c0_38 = arith.constant 0 : index
    %99 = vector.load %arg9[%c0_37, %c0_38] : memref<16x1xf32, #tpu.memory_space<vmem>>, vector<16x1xf32>
    %100 = vector.broadcast %99 : vector<16x1xf32> to vector<16x100xf32>
    %101 = arith.addf %98, %100 : vector<16x100xf32>
    %cst_39 = arith.constant 0.000000e+00 : f32
    %102 = vector.broadcast %cst_39 : f32 to vector<16x100xf32>
    %103 = arith.cmpf oge, %101, %102 : vector<16x100xf32>
    %cst_40 = arith.constant 0.00999999977 : f32
    %104 = vector.broadcast %cst_40 : f32 to vector<16x100xf32>
    %105 = arith.mulf %104, %101 : vector<16x100xf32>
    %106 = arith.select %103, %101, %105 : vector<16x100xi1>, vector<16x100xf32>
    %107 = vector.extract_strided_slice %106 {offsets = [0, 0], sizes = [16, 99], strides = [1, 1]} : vector<16x100xf32> to vector<16x99xf32>
    %108 = vector.extract_strided_slice %106 {offsets = [0, 1], sizes = [16, 99], strides = [1, 1]} : vector<16x100xf32> to vector<16x99xf32>
    %109 = arith.maximumf %107, %108 : vector<16x99xf32>
    %110 = vector.extract_strided_slice %109 {offsets = [0, 0], sizes = [16, 89], strides = [1, 1]} : vector<16x99xf32> to vector<16x89xf32>
    %111 = vector.extract_strided_slice %109 {offsets = [0, 10], sizes = [16, 89], strides = [1, 1]} : vector<16x99xf32> to vector<16x89xf32>
    %112 = arith.maximumf %110, %111 : vector<16x89xf32>
    %113 = arith.truncf %112 : vector<16x89xf32> to vector<16x89xbf16>
    %c0_41 = arith.constant 0 : index
    %c0_42 = arith.constant 0 : index
    %114 = vector.load %arg18[%c0_41, %c0_42] : memref<89x50xbf16, #tpu.memory_space<vmem>>, vector<89x50xbf16>
    %cst_43 = arith.constant dense<0.000000e+00> : vector<16x50xf32>
    %115 = tpu.matmul %113, %114, %cst_43 {dimension_numbers = #tpu.dot_dimension_numbers<[1], [0], [0], [1], [0, 0, 1, 1], [], []>} : vector<16x89xbf16>, vector<89x50xbf16>, vector<16x50xf32> -> vector<16x50xf32>
    %116 = arith.truncf %115 : vector<16x50xf32> to vector<16x50xbf16>
    %117 = vector.extract_strided_slice %116 {offsets = [0, 0], sizes = [16, 36], strides = [1, 1]} : vector<16x50xbf16> to vector<16x36xbf16>
    %118 = vector.extract_strided_slice %116 {offsets = [0, 1], sizes = [16, 36], strides = [1, 1]} : vector<16x50xbf16> to vector<16x36xbf16>
    %119 = vector.extract_strided_slice %116 {offsets = [0, 2], sizes = [16, 36], strides = [1, 1]} : vector<16x50xbf16> to vector<16x36xbf16>
    %120 = vector.extract_strided_slice %116 {offsets = [0, 6], sizes = [16, 36], strides = [1, 1]} : vector<16x50xbf16> to vector<16x36xbf16>
    %121 = vector.extract_strided_slice %116 {offsets = [0, 7], sizes = [16, 36], strides = [1, 1]} : vector<16x50xbf16> to vector<16x36xbf16>
    %122 = vector.extract_strided_slice %116 {offsets = [0, 8], sizes = [16, 36], strides = [1, 1]} : vector<16x50xbf16> to vector<16x36xbf16>
    %123 = vector.extract_strided_slice %116 {offsets = [0, 12], sizes = [16, 36], strides = [1, 1]} : vector<16x50xbf16> to vector<16x36xbf16>
    %124 = vector.extract_strided_slice %116 {offsets = [0, 13], sizes = [16, 36], strides = [1, 1]} : vector<16x50xbf16> to vector<16x36xbf16>
    %125 = vector.extract_strided_slice %116 {offsets = [0, 14], sizes = [16, 36], strides = [1, 1]} : vector<16x50xbf16> to vector<16x36xbf16>
    %126 = tpu.concatenate %117, %118, %119, %120, %121, %122, %123, %124, %125 in 0 : vector<16x36xbf16>, vector<16x36xbf16>, vector<16x36xbf16>, vector<16x36xbf16>, vector<16x36xbf16>, vector<16x36xbf16>, vector<16x36xbf16>, vector<16x36xbf16>, vector<16x36xbf16> -> vector<144x36xbf16>
    %c0_44 = arith.constant 0 : index
    %c0_45 = arith.constant 0 : index
    %127 = vector.load %arg10[%c0_44, %c0_45] : memref<32x144xbf16, #tpu.memory_space<vmem>>, vector<32x144xbf16>
    %cst_46 = arith.constant dense<0.000000e+00> : vector<32x36xf32>
    %128 = tpu.matmul %127, %126, %cst_46 {dimension_numbers = #tpu.dot_dimension_numbers<[1], [0], [0], [1], [0, 0, 1, 1], [], []>} : vector<32x144xbf16>, vector<144x36xbf16>, vector<32x36xf32> -> vector<32x36xf32>
    %c0_47 = arith.constant 0 : index
    %c0_48 = arith.constant 0 : index
    %129 = vector.load %arg11[%c0_47, %c0_48] : memref<32x1xf32, #tpu.memory_space<vmem>>, vector<32x1xf32>
    %130 = vector.broadcast %129 : vector<32x1xf32> to vector<32x36xf32>
    %131 = arith.addf %128, %130 : vector<32x36xf32>
    %cst_49 = arith.constant 0.000000e+00 : f32
    %132 = vector.broadcast %cst_49 : f32 to vector<32x36xf32>
    %133 = arith.cmpf oge, %131, %132 : vector<32x36xf32>
    %cst_50 = arith.constant 0.00999999977 : f32
    %134 = vector.broadcast %cst_50 : f32 to vector<32x36xf32>
    %135 = arith.mulf %134, %131 : vector<32x36xf32>
    %136 = arith.select %133, %131, %135 : vector<32x36xi1>, vector<32x36xf32>
    %c0_51 = arith.constant 0 : index
    %c0_52 = arith.constant 0 : index
    %137 = vector.load %arg16[%c0_51, %c0_52] : memref<1x36xf32, #tpu.memory_space<vmem>>, vector<1x36xf32>
    %138 = vector.broadcast %137 : vector<1x36xf32> to vector<32x36xf32>
    %139 = arith.mulf %136, %138 : vector<32x36xf32>
    %140 = arith.truncf %139 : vector<32x36xf32> to vector<32x36xbf16>
    %cst_53 = arith.constant 0.000000e+00 : bf16
    %141 = vector.broadcast %cst_53 : bf16 to vector<32x7xbf16>
    %142 = tpu.concatenate %141, %140, %141 in 1 : vector<32x7xbf16>, vector<32x36xbf16>, vector<32x7xbf16> -> vector<32x50xbf16>
    %143 = vector.extract_strided_slice %142 {offsets = [0, 0], sizes = [32, 36], strides = [1, 1]} : vector<32x50xbf16> to vector<32x36xbf16>
    %144 = vector.extract_strided_slice %142 {offsets = [0, 1], sizes = [32, 36], strides = [1, 1]} : vector<32x50xbf16> to vector<32x36xbf16>
    %145 = vector.extract_strided_slice %142 {offsets = [0, 2], sizes = [32, 36], strides = [1, 1]} : vector<32x50xbf16> to vector<32x36xbf16>
    %146 = vector.extract_strided_slice %142 {offsets = [0, 6], sizes = [32, 36], strides = [1, 1]} : vector<32x50xbf16> to vector<32x36xbf16>
    %147 = vector.extract_strided_slice %142 {offsets = [0, 7], sizes = [32, 36], strides = [1, 1]} : vector<32x50xbf16> to vector<32x36xbf16>
    %148 = vector.extract_strided_slice %142 {offsets = [0, 8], sizes = [32, 36], strides = [1, 1]} : vector<32x50xbf16> to vector<32x36xbf16>
    %149 = vector.extract_strided_slice %142 {offsets = [0, 12], sizes = [32, 36], strides = [1, 1]} : vector<32x50xbf16> to vector<32x36xbf16>
    %150 = vector.extract_strided_slice %142 {offsets = [0, 13], sizes = [32, 36], strides = [1, 1]} : vector<32x50xbf16> to vector<32x36xbf16>
    %151 = vector.extract_strided_slice %142 {offsets = [0, 14], sizes = [32, 36], strides = [1, 1]} : vector<32x50xbf16> to vector<32x36xbf16>
    %152 = tpu.concatenate %143, %144, %145, %146, %147, %148, %149, %150, %151 in 0 : vector<32x36xbf16>, vector<32x36xbf16>, vector<32x36xbf16>, vector<32x36xbf16>, vector<32x36xbf16>, vector<32x36xbf16>, vector<32x36xbf16>, vector<32x36xbf16>, vector<32x36xbf16> -> vector<288x36xbf16>
    %c0_54 = arith.constant 0 : index
    %c0_55 = arith.constant 0 : index
    %153 = vector.load %arg12[%c0_54, %c0_55] : memref<16x288xbf16, #tpu.memory_space<vmem>>, vector<16x288xbf16>
    %cst_56 = arith.constant dense<0.000000e+00> : vector<16x36xf32>
    %154 = tpu.matmul %153, %152, %cst_56 {dimension_numbers = #tpu.dot_dimension_numbers<[1], [0], [0], [1], [0, 0, 1, 1], [], []>} : vector<16x288xbf16>, vector<288x36xbf16>, vector<16x36xf32> -> vector<16x36xf32>
    %c0_57 = arith.constant 0 : index
    %c0_58 = arith.constant 0 : index
    %155 = vector.load %arg13[%c0_57, %c0_58] : memref<16x1xf32, #tpu.memory_space<vmem>>, vector<16x1xf32>
    %156 = vector.broadcast %155 : vector<16x1xf32> to vector<16x36xf32>
    %157 = arith.addf %154, %156 : vector<16x36xf32>
    %cst_59 = arith.constant 0.000000e+00 : f32
    %158 = vector.broadcast %cst_59 : f32 to vector<16x36xf32>
    %159 = arith.cmpf oge, %157, %158 : vector<16x36xf32>
    %cst_60 = arith.constant 0.00999999977 : f32
    %160 = vector.broadcast %cst_60 : f32 to vector<16x36xf32>
    %161 = arith.mulf %160, %157 : vector<16x36xf32>
    %162 = arith.select %159, %157, %161 : vector<16x36xi1>, vector<16x36xf32>
    %163 = tpu.concatenate %106, %162 in 1 : vector<16x100xf32>, vector<16x36xf32> -> vector<16x136xf32>
    %c0_61 = arith.constant 0 : index
    %c0_62 = arith.constant 0 : index
    %c0_63 = arith.constant 0 : index
    %164 = vector.load %arg20[%c0_61, %c0_62, %c0_63] : memref<1x16x136xf32, #tpu.memory_space<vmem>>, vector<1x16x136xf32>
    %165 = vector.shape_cast %164 : vector<1x16x136xf32> to vector<16x136xf32>
    %166 = vector.shape_cast %163 : vector<16x136xf32> to vector<1x16x136xf32>
    tpu.vector_store %arg20[%c0_61, %c0_62, %c0_63], %166 {strides = array<i32>} : memref<1x16x136xf32, #tpu.memory_space<vmem>>, vector<1x16x136xf32>,
    return
  }
  func.func @transform_0(%arg0: i32) -> (i32, i32, i32) {
    %c0_i32 = arith.constant 0 : i32
    %c0_i32_0 = arith.constant 0 : i32
    %c0_i32_1 = arith.constant 0 : i32
    return %arg0, %c0_i32, %c0_i32_0 : i32, i32, i32
  }
  func.func @transform_1(%arg0: i32) -> (i32, i32) {
    %c0_i32 = arith.constant 0 : i32
    %c0_i32_0 = arith.constant 0 : i32
    %c0_i32_1 = arith.constant 0 : i32
    return %c0_i32, %c0_i32_0 : i32, i32
  }
  func.func @transform_2(%arg0: i32) -> (i32, i32) {
    %c0_i32 = arith.constant 0 : i32
    %c0_i32_0 = arith.constant 0 : i32
    %c0_i32_1 = arith.constant 0 : i32
    return %c0_i32, %c0_i32_0 : i32, i32
  }
  func.func @transform_3(%arg0: i32) -> (i32, i32) {
    %c0_i32 = arith.constant 0 : i32
    %c0_i32_0 = arith.constant 0 : i32
    %c0_i32_1 = arith.constant 0 : i32
    return %c0_i32, %c0_i32_0 : i32, i32
  }
  func.func @transform_4(%arg0: i32) -> (i32, i32) {
    %c0_i32 = arith.constant 0 : i32
    %c0_i32_0 = arith.constant 0 : i32
    %c0_i32_1 = arith.constant 0 : i32
    return %c0_i32, %c0_i32_0 : i32, i32
  }
  func.func @transform_5(%arg0: i32) -> (i32, i32) {
    %c0_i32 = arith.constant 0 : i32
    %c0_i32_0 = arith.constant 0 : i32
    %c0_i32_1 = arith.constant 0 : i32
    return %c0_i32, %c0_i32_0 : i32, i32
  }
  func.func @transform_6(%arg0: i32) -> (i32, i32) {
    %c0_i32 = arith.constant 0 : i32
    %c0_i32_0 = arith.constant 0 : i32
    %c0_i32_1 = arith.constant 0 : i32
    return %c0_i32, %c0_i32_0 : i32, i32
  }
  func.func @transform_7(%arg0: i32) -> (i32, i32) {
    %c0_i32 = arith.constant 0 : i32
    %c0_i32_0 = arith.constant 0 : i32
    %c0_i32_1 = arith.constant 0 : i32
    return %c0_i32, %c0_i32_0 : i32, i32
  }
  func.func @transform_8(%arg0: i32) -> (i32, i32) {
    %c0_i32 = arith.constant 0 : i32
    %c0_i32_0 = arith.constant 0 : i32
    %c0_i32_1 = arith.constant 0 : i32
    return %c0_i32, %c0_i32_0 : i32, i32
  }
  func.func @transform_9(%arg0: i32) -> (i32, i32) {
    %c0_i32 = arith.constant 0 : i32
    %c0_i32_0 = arith.constant 0 : i32
    %c0_i32_1 = arith.constant 0 : i32
    return %c0_i32, %c0_i32_0 : i32, i32
  }
  func.func @transform_10(%arg0: i32) -> (i32, i32) {
    %c0_i32 = arith.constant 0 : i32
    %c0_i32_0 = arith.constant 0 : i32
    %c0_i32_1 = arith.constant 0 : i32
    return %c0_i32, %c0_i32_0 : i32, i32
  }
  func.func @transform_11(%arg0: i32) -> (i32, i32) {
    %c0_i32 = arith.constant 0 : i32
    %c0_i32_0 = arith.constant 0 : i32
    %c0_i32_1 = arith.constant 0 : i32
    return %c0_i32, %c0_i32_0 : i32, i32
  }
  func.func @transform_12(%arg0: i32) -> (i32, i32) {
    %c0_i32 = arith.constant 0 : i32
    %c0_i32_0 = arith.constant 0 : i32
    %c0_i32_1 = arith.constant 0 : i32
    return %c0_i32, %c0_i32_0 : i32, i32
  }
  func.func @transform_13(%arg0: i32) -> (i32, i32) {
    %c0_i32 = arith.constant 0 : i32
    %c0_i32_0 = arith.constant 0 : i32
    %c0_i32_1 = arith.constant 0 : i32
    return %c0_i32, %c0_i32_0 : i32, i32
  }
  func.func @transform_14(%arg0: i32) -> (i32, i32) {
    %c0_i32 = arith.constant 0 : i32
    %c0_i32_0 = arith.constant 0 : i32
    %c0_i32_1 = arith.constant 0 : i32
    return %c0_i32, %c0_i32_0 : i32, i32
  }
  func.func @transform_15(%arg0: i32) -> (i32, i32) {
    %c0_i32 = arith.constant 0 : i32
    %c0_i32_0 = arith.constant 0 : i32
    %c0_i32_1 = arith.constant 0 : i32
    return %c0_i32, %c0_i32_0 : i32, i32
  }
  func.func @transform_16(%arg0: i32) -> (i32, i32) {
    %c0_i32 = arith.constant 0 : i32
    %c0_i32_0 = arith.constant 0 : i32
    %c0_i32_1 = arith.constant 0 : i32
    return %c0_i32, %c0_i32_0 : i32, i32
  }
  func.func @transform_17(%arg0: i32) -> (i32, i32) {
    %c0_i32 = arith.constant 0 : i32
    %c0_i32_0 = arith.constant 0 : i32
    %c0_i32_1 = arith.constant 0 : i32
    return %c0_i32, %c0_i32_0 : i32, i32
  }
  func.func @transform_18(%arg0: i32) -> (i32, i32, i32) {
    %c0_i32 = arith.constant 0 : i32
    %c0_i32_0 = arith.constant 0 : i32
    %c0_i32_1 = arith.constant 0 : i32
    return %arg0, %c0_i32, %c0_i32_0 : i32, i32, i32
  }
  func.func @transform_19(%arg0: i32) -> (i32, i32, i32) {
    %c0_i32 = arith.constant 0 : i32
    %c0_i32_0 = arith.constant 0 : i32
    %c0_i32_1 = arith.constant 0 : i32
    return %arg0, %c0_i32, %c0_i32_0 : i32, i32, i32
  }
}

</mosaic_0001>

<llo_original>
// kernel: encoder_forward.1
$region0: #{encoder_forward.1}
  #allocation0 [shape = 'u32[]', space=smem, size = 0x4, offset = 0x4, fixed_abs, tag = 'smem constant byte address 0x4 - core index']
  #allocation1 [shape = 'u32[144,128]{1,0:T(1,128)}', space=vmem, size = 0x12000, scoped, tag = 'internal scratch']
  %s0 = inlined_call_operand.vmem [shape: bf16[2,8,362], index: 0, kind: input, shape index: {}]
  %s1 = inlined_call_operand.vmem [shape: bf16[8,72], index: 1, kind: input, shape index: {}]
  %s2 = inlined_call_operand.vmem [shape: f32[8,1], index: 2, kind: input, shape index: {}]
  %s3 = inlined_call_operand.vmem [shape: bf16[8,72], index: 3, kind: input, shape index: {}]
  %s4 = inlined_call_operand.vmem [shape: f32[8,1], index: 4, kind: input, shape index: {}]
  %s5 = inlined_call_operand.vmem [shape: bf16[16,72], index: 5, kind: input, shape index: {}]
  %s6 = inlined_call_operand.vmem [shape: f32[16,1], index: 6, kind: input, shape index: {}]
  %s7 = inlined_call_operand.vmem [shape: bf16[16,144], index: 7, kind: input, shape index: {}]
  %s8 = inlined_call_operand.vmem [shape: f32[16,1], index: 8, kind: input, shape index: {}]
  %s9 = inlined_call_operand.vmem [shape: bf16[32,144], index: 9, kind: input, shape index: {}]
  %s10 = inlined_call_operand.vmem [shape: f32[32,1], index: 10, kind: input, shape index: {}]
  %s11 = inlined_call_operand.vmem [shape: bf16[16,288], index: 11, kind: input, shape index: {}]
  %s12 = inlined_call_operand.vmem [shape: f32[16,1], index: 12, kind: input, shape index: {}]
  %s13 = inlined_call_operand.vmem [shape: f32[1,324], index: 13, kind: input, shape index: {}]
  %s14 = inlined_call_operand.vmem [shape: f32[1,100], index: 14, kind: input, shape index: {}]
  %s15 = inlined_call_operand.vmem [shape: f32[1,36], index: 15, kind: input, shape index: {}]
  %s16 = inlined_call_operand.vmem [shape: bf16[305,122], index: 16, kind: input, shape index: {}]
  %s17 = inlined_call_operand.vmem [shape: bf16[89,50], index: 17, kind: input, shape index: {}]
  %s18 = inlined_call_operand.vmem [shape: f32[2,8,324], index: 18, kind: output, shape index: {0}]
  %s19 = inlined_call_operand.vmem [shape: f32[2,16,136], index: 19, kind: output, shape index: {1}]
  %20 = xla_tuple %s18, %s19
  %s21 = sld [smem:[#allocation0]]
  $region113: #{encoder_forward.1} parent=0
    _
  %s23 = ssub.s32 1, %s21
  %s24 = scalar_select 0, %s23, %s21
  loop: start=0, step=1, limit=4
  $region2: #{encoder_forward.1} parent=0 // loop_pre_header
    _
  $region3: #{encoder_forward.1} parent=0 // loop_header
    %s26 = sphi 0, %s30
    %p27 = scmp.ge.s32.totalorder %s26, 4
    %s36 = sphi 0, %s38
    %s39 = sphi 0, %s36
    %s40 = sphi 0, %s39
    %s56 = sphi 0, %s40
    %s60 = sphi 0, %s60
    %s62 = sphi 0, %s60
    %s63 = sphi 0, %s62
    %s77 = sphi 0, %s63
    %s81 = sphi 0, %s81
    %s83 = sphi 0, %s81
    %s84 = sphi 0, %s83
    %s98 = sphi 0, %s84
    %s102 = sphi 0, %s102
    %s104 = sphi 0, %s102
    %s105 = sphi 0, %s104
    %s119 = sphi 0, %s105
    %s123 = sphi 0, %s123
    %s125 = sphi 0, %s123
    %s126 = sphi 0, %s125
    %s140 = sphi 0, %s126
    %s144 = sphi 0, %s144
    %s146 = sphi 0, %s144
    %s147 = sphi 0, %s146
    %s161 = sphi 0, %s147
    %s165 = sphi 0, %s165
    %s167 = sphi 0, %s165
    %s168 = sphi 0, %s167
    %s182 = sphi 0, %s168
    %s186 = sphi 0, %s186
    %s188 = sphi 0, %s186
    %s189 = sphi 0, %s188
    %s203 = sphi 0, %s189
    %s207 = sphi 0, %s207
    %s209 = sphi 0, %s207
    %s210 = sphi 0, %s209
    %s224 = sphi 0, %s210
    %s228 = sphi 0, %s228
    %s230 = sphi 0, %s228
    %s231 = sphi 0, %s230
    %s245 = sphi 0, %s231
    %s249 = sphi 0, %s249
    %s251 = sphi 0, %s249
    %s252 = sphi 0, %s251
    %s266 = sphi 0, %s252
    %s270 = sphi 0, %s270
    %s272 = sphi 0, %s270
    %s273 = sphi 0, %s272
    %s287 = sphi 0, %s273
    %s291 = sphi 0, %s291
    %s293 = sphi 0, %s291
    %s294 = sphi 0, %s293
    %s308 = sphi 0, %s294
    %s312 = sphi 0, %s312
    %s314 = sphi 0, %s312
    %s315 = sphi 0, %s314
    %s329 = sphi 0, %s315
    %s333 = sphi 0, %s333
    %s335 = sphi 0, %s333
    %s336 = sphi 0, %s335
    %s350 = sphi 0, %s336
    %s354 = sphi 0, %s354
    %s356 = sphi 0, %s354
    %s357 = sphi 0, %s356
    %s371 = sphi 0, %s357
    %s375 = sphi 0, %s375
    %s377 = sphi 0, %s375
    %s378 = sphi 0, %s377
    %s392 = sphi 0, %s378
    %s396 = sphi 0, %s396
    %s398 = sphi 0, %s396
    %s399 = sphi 0, %s398
    %s413 = sphi 0, %s399
    %s419 = sphi 0, %s421
    %s422 = sphi 0, %s419
    %s423 = sphi 0, %s422
    %s439 = sphi 0, %s423
    %s445 = sphi 0, %s447
    %s448 = sphi 0, %s445
    %s449 = sphi 0, %s448
    %s465 = sphi 0, %s449
  $region4: #{encoder_forward.1} parent=0 // loop_header_branch
    %29 = sbr.rel (%p27) target = $region8
  $region5: #{encoder_forward.1} parent=0 // loop_body
    %s31 = ssub.s32 %s26, 1
    %s32 = ssub.s32 %s26, 2
    %s33 = sadd.s32 %s26, 1
    %s34 = ssub.s32 %s26, %s33
    %p35 = scmp.eq.s32.totalorder %s34, 0
    %s37 = sadd.s32 %s36, 1
    %s38 = scalar_select %p35, %s36, %s37
    %p41 = pneg %p35
    %p42 = scmp.eq.s32.totalorder %s26, 1
    %p43 = por %p41, %p42
    %p44 = scmp.ne.s32.totalorder %s36, %s39
    %p45 = scmp.eq.s32.totalorder %s26, 0
    %p46 = por %p44, %p45
    %p47 = scmp.ne.s32.totalorder %s36, %s39
    %p48 = scmp.eq.s32.totalorder %s31, 1
    %p49 = por %p47, %p48
    %p50 = scmp.ne.s32.totalorder %s39, %s40
    %p51 = scmp.eq.s32.totalorder %s31, 0
    %p52 = por %p50, %p51
    %p53 = scmp.ne.s32.totalorder %s39, %s40
    %p54 = scmp.eq.s32.totalorder %s32, 1
    %p55 = por %p53, %p54
    %p57 = scmp.ne.s32.totalorder %s40, %s56
    %p58 = scmp.eq.s32.totalorder %s32, 0
    %p59 = por %p57, %p58
    %s61 = sadd.s32 %s60, 1
    %p64 = scmp.eq.s32.totalorder %s26, 1
    %p65 = scmp.ne.s32.totalorder %s60, %s62
    %p66 = scmp.eq.s32.totalorder %s26, 0
    %p67 = por %p65, %p66
    %p68 = scmp.ne.s32.totalorder %s60, %s62
    %p69 = scmp.eq.s32.totalorder %s31, 1
    %p70 = por %p68, %p69
    %p71 = scmp.ne.s32.totalorder %s62, %s63
    %p72 = scmp.eq.s32.totalorder %s31, 0
    %p73 = por %p71, %p72
    %p74 = scmp.ne.s32.totalorder %s62, %s63
    %p75 = scmp.eq.s32.totalorder %s32, 1
    %p76 = por %p74, %p75
    %p78 = scmp.ne.s32.totalorder %s63, %s77
    %p79 = scmp.eq.s32.totalorder %s32, 0
    %p80 = por %p78, %p79
    %s82 = sadd.s32 %s81, 1
    %p85 = scmp.eq.s32.totalorder %s26, 1
    %p86 = scmp.ne.s32.totalorder %s81, %s83
    %p87 = scmp.eq.s32.totalorder %s26, 0
    %p88 = por %p86, %p87
    %p89 = scmp.ne.s32.totalorder %s81, %s83
    %p90 = scmp.eq.s32.totalorder %s31, 1
    %p91 = por %p89, %p90
    %p92 = scmp.ne.s32.totalorder %s83, %s84
    %p93 = scmp.eq.s32.totalorder %s31, 0
    %p94 = por %p92, %p93
    %p95 = scmp.ne.s32.totalorder %s83, %s84
    %p96 = scmp.eq.s32.totalorder %s32, 1
    %p97 = por %p95, %p96
    %p99 = scmp.ne.s32.totalorder %s84, %s98
    %p100 = scmp.eq.s32.totalorder %s32, 0
    %p101 = por %p99, %p100
    %s103 = sadd.s32 %s102, 1
    %p106 = scmp.eq.s32.totalorder %s26, 1
    %p107 = scmp.ne.s32.totalorder %s102, %s104
    %p108 = scmp.eq.s32.totalorder %s26, 0
    %p109 = por %p107, %p108
    %p110 = scmp.ne.s32.totalorder %s102, %s104
    %p111 = scmp.eq.s32.totalorder %s31, 1
    %p112 = por %p110, %p111
    %p113 = scmp.ne.s32.totalorder %s104, %s105
    %p114 = scmp.eq.s32.totalorder %s31, 0
    %p115 = por %p113, %p114
    %p116 = scmp.ne.s32.totalorder %s104, %s105
    %p117 = scmp.eq.s32.totalorder %s32, 1
    %p118 = por %p116, %p117
    %p120 = scmp.ne.s32.totalorder %s105, %s119
    %p121 = scmp.eq.s32.totalorder %s32, 0
    %p122 = por %p120, %p121
    %s124 = sadd.s32 %s123, 1
    %p127 = scmp.eq.s32.totalorder %s26, 1
    %p128 = scmp.ne.s32.totalorder %s123, %s125
    %p129 = scmp.eq.s32.totalorder %s26, 0
    %p130 = por %p128, %p129
    %p131 = scmp.ne.s32.totalorder %s123, %s125
    %p132 = scmp.eq.s32.totalorder %s31, 1
    %p133 = por %p131, %p132
    %p134 = scmp.ne.s32.totalorder %s125, %s126
    %p135 = scmp.eq.s32.totalorder %s31, 0
    %p136 = por %p134, %p135
    %p137 = scmp.ne.s32.totalorder %s125, %s126
    %p138 = scmp.eq.s32.totalorder %s32, 1
    %p139 = por %p137, %p138
    %p141 = scmp.ne.s32.totalorder %s126, %s140
    %p142 = scmp.eq.s32.totalorder %s32, 0
    %p143 = por %p141, %p142
    %s145 = sadd.s32 %s144, 1
    %p148 = scmp.eq.s32.totalorder %s26, 1
    %p149 = scmp.ne.s32.totalorder %s144, %s146
    %p150 = scmp.eq.s32.totalorder %s26, 0
    %p151 = por %p149, %p150
    %p152 = scmp.ne.s32.totalorder %s144, %s146
    %p153 = scmp.eq.s32.totalorder %s31, 1
    %p154 = por %p152, %p153
    %p155 = scmp.ne.s32.totalorder %s146, %s147
    %p156 = scmp.eq.s32.totalorder %s31, 0
    %p157 = por %p155, %p156
    %p158 = scmp.ne.s32.totalorder %s146, %s147
    %p159 = scmp.eq.s32.totalorder %s32, 1
    %p160 = por %p158, %p159
    %p162 = scmp.ne.s32.totalorder %s147, %s161
    %p163 = scmp.eq.s32.totalorder %s32, 0
    %p164 = por %p162, %p163
    %s166 = sadd.s32 %s165, 1
    %p169 = scmp.eq.s32.totalorder %s26, 1
    %p170 = scmp.ne.s32.totalorder %s165, %s167
    %p171 = scmp.eq.s32.totalorder %s26, 0
    %p172 = por %p170, %p171
    %p173 = scmp.ne.s32.totalorder %s165, %s167
    %p174 = scmp.eq.s32.totalorder %s31, 1
    %p175 = por %p173, %p174
    %p176 = scmp.ne.s32.totalorder %s167, %s168
    %p177 = scmp.eq.s32.totalorder %s31, 0
    %p178 = por %p176, %p177
    %p179 = scmp.ne.s32.totalorder %s167, %s168
    %p180 = scmp.eq.s32.totalorder %s32, 1
    %p181 = por %p179, %p180
    %p183 = scmp.ne.s32.totalorder %s168, %s182
    %p184 = scmp.eq.s32.totalorder %s32, 0
    %p185 = por %p183, %p184
    %s187 = sadd.s32 %s186, 1
    %p190 = scmp.eq.s32.totalorder %s26, 1
    %p191 = scmp.ne.s32.totalorder %s186, %s188
    %p192 = scmp.eq.s32.totalorder %s26, 0
    %p193 = por %p191, %p192
    %p194 = scmp.ne.s32.totalorder %s186, %s188
    %p195 = scmp.eq.s32.totalorder %s31, 1
    %p196 = por %p194, %p195
    %p197 = scmp.ne.s32.totalorder %s188, %s189
    %p198 = scmp.eq.s32.totalorder %s31, 0
    %p199 = por %p197, %p198
    %p200 = scmp.ne.s32.totalorder %s188, %s189
    %p201 = scmp.eq.s32.totalorder %s32, 1
    %p202 = por %p200, %p201
    %p204 = scmp.ne.s32.totalorder %s189, %s203
    %p205 = scmp.eq.s32.totalorder %s32, 0
    %p206 = por %p204, %p205
    %s208 = sadd.s32 %s207, 1
    %p211 = scmp.eq.s32.totalorder %s26, 1
    %p212 = scmp.ne.s32.totalorder %s207, %s209
    %p213 = scmp.eq.s32.totalorder %s26, 0
    %p214 = por %p212, %p213
    %p215 = scmp.ne.s32.totalorder %s207, %s209
    %p216 = scmp.eq.s32.totalorder %s31, 1
    %p217 = por %p215, %p216
    %p218 = scmp.ne.s32.totalorder %s209, %s210
    %p219 = scmp.eq.s32.totalorder %s31, 0
    %p220 = por %p218, %p219
    %p221 = scmp.ne.s32.totalorder %s209, %s210
    %p222 = scmp.eq.s32.totalorder %s32, 1
    %p223 = por %p221, %p222
    %p225 = scmp.ne.s32.totalorder %s210, %s224
    %p226 = scmp.eq.s32.totalorder %s32, 0
    %p227 = por %p225, %p226
    %s229 = sadd.s32 %s228, 1
    %p232 = scmp.eq.s32.totalorder %s26, 1
    %p233 = scmp.ne.s32.totalorder %s228, %s230
    %p234 = scmp.eq.s32.totalorder %s26, 0
    %p235 = por %p233, %p234
    %p236 = scmp.ne.s32.totalorder %s228, %s230
    %p237 = scmp.eq.s32.totalorder %s31, 1
    %p238 = por %p236, %p237
    %p239 = scmp.ne.s32.totalorder %s230, %s231
    %p240 = scmp.eq.s32.totalorder %s31, 0
    %p241 = por %p239, %p240
    %p242 = scmp.ne.s32.totalorder %s230, %s231
    %p243 = scmp.eq.s32.totalorder %s32, 1
    %p244 = por %p242, %p243
    %p246 = scmp.ne.s32.totalorder %s231, %s245
    %p247 = scmp.eq.s32.totalorder %s32, 0
    %p248 = por %p246, %p247
    %s250 = sadd.s32 %s249, 1
    %p253 = scmp.eq.s32.totalorder %s26, 1
    %p254 = scmp.ne.s32.totalorder %s249, %s251
    %p255 = scmp.eq.s32.totalorder %s26, 0
    %p256 = por %p254, %p255
    %p257 = scmp.ne.s32.totalorder %s249, %s251
    %p258 = scmp.eq.s32.totalorder %s31, 1
    %p259 = por %p257, %p258
    %p260 = scmp.ne.s32.totalorder %s251, %s252
    %p261 = scmp.eq.s32.totalorder %s31, 0
    %p262 = por %p260, %p261
    %p263 = scmp.ne.s32.totalorder %s251, %s252
    %p264 = scmp.eq.s32.totalorder %s32, 1
    %p265 = por %p263, %p264
    %p267 = scmp.ne.s32.totalorder %s252, %s266
    %p268 = scmp.eq.s32.totalorder %s32, 0
    %p269 = por %p267, %p268
    %s271 = sadd.s32 %s270, 1
    %p274 = scmp.eq.s32.totalorder %s26, 1
    %p275 = scmp.ne.s32.totalorder %s270, %s272
    %p276 = scmp.eq.s32.totalorder %s26, 0
    %p277 = por %p275, %p276
    %p278 = scmp.ne.s32.totalorder %s270, %s272
    %p279 = scmp.eq.s32.totalorder %s31, 1
    %p280 = por %p278, %p279
    %p281 = scmp.ne.s32.totalorder %s272, %s273
    %p282 = scmp.eq.s32.totalorder %s31, 0
    %p283 = por %p281, %p282
    %p284 = scmp.ne.s32.totalorder %s272, %s273
    %p285 = scmp.eq.s32.totalorder %s32, 1
    %p286 = por %p284, %p285
    %p288 = scmp.ne.s32.totalorder %s273, %s287
    %p289 = scmp.eq.s32.totalorder %s32, 0
    %p290 = por %p288, %p289
    %s292 = sadd.s32 %s291, 1
    %p295 = scmp.eq.s32.totalorder %s26, 1
    %p296 = scmp.ne.s32.totalorder %s291, %s293
    %p297 = scmp.eq.s32.totalorder %s26, 0
    %p298 = por %p296, %p297
    %p299 = scmp.ne.s32.totalorder %s291, %s293
    %p300 = scmp.eq.s32.totalorder %s31, 1
    %p301 = por %p299, %p300
    %p302 = scmp.ne.s32.totalorder %s293, %s294
    %p303 = scmp.eq.s32.totalorder %s31, 0
    %p304 = por %p302, %p303
    %p305 = scmp.ne.s32.totalorder %s293, %s294
    %p306 = scmp.eq.s32.totalorder %s32, 1
    %p307 = por %p305, %p306
    %p309 = scmp.ne.s32.totalorder %s294, %s308
    %p310 = scmp.eq.s32.totalorder %s32, 0
    %p311 = por %p309, %p310
    %s313 = sadd.s32 %s312, 1
    %p316 = scmp.eq.s32.totalorder %s26, 1
    %p317 = scmp.ne.s32.totalorder %s312, %s314
    %p318 = scmp.eq.s32.totalorder %s26, 0
    %p319 = por %p317, %p318
    %p320 = scmp.ne.s32.totalorder %s312, %s314
    %p321 = scmp.eq.s32.totalorder %s31, 1
    %p322 = por %p320, %p321
    %p323 = scmp.ne.s32.totalorder %s314, %s315
    %p324 = scmp.eq.s32.totalorder %s31, 0
    %p325 = por %p323, %p324
    %p326 = scmp.ne.s32.totalorder %s314, %s315
    %p327 = scmp.eq.s32.totalorder %s32, 1
    %p328 = por %p326, %p327
    %p330 = scmp.ne.s32.totalorder %s315, %s329
    %p331 = scmp.eq.s32.totalorder %s32, 0
    %p332 = por %p330, %p331
    %s334 = sadd.s32 %s333, 1
    %p337 = scmp.eq.s32.totalorder %s26, 1
    %p338 = scmp.ne.s32.totalorder %s333, %s335
    %p339 = scmp.eq.s32.totalorder %s26, 0
    %p340 = por %p338, %p339
    %p341 = scmp.ne.s32.totalorder %s333, %s335
    %p342 = scmp.eq.s32.totalorder %s31, 1
    %p343 = por %p341, %p342
    %p344 = scmp.ne.s32.totalorder %s335, %s336
    %p345 = scmp.eq.s32.totalorder %s31, 0
    %p346 = por %p344, %p345
    %p347 = scmp.ne.s32.totalorder %s335, %s336
    %p348 = scmp.eq.s32.totalorder %s32, 1
    %p349 = por %p347, %p348
    %p351 = scmp.ne.s32.totalorder %s336, %s350
    %p352 = scmp.eq.s32.totalorder %s32, 0
    %p353 = por %p351, %p352
    %s355 = sadd.s32 %s354, 1
    %p358 = scmp.eq.s32.totalorder %s26, 1
    %p359 = scmp.ne.s32.totalorder %s354, %s356
    %p360 = scmp.eq.s32.totalorder %s26, 0
    %p361 = por %p359, %p360
    %p362 = scmp.ne.s32.totalorder %s354, %s356
    %p363 = scmp.eq.s32.totalorder %s31, 1
    %p364 = por %p362, %p363
    %p365 = scmp.ne.s32.totalorder %s356, %s357
    %p366 = scmp.eq.s32.totalorder %s31, 0
    %p367 = por %p365, %p366
    %p368 = scmp.ne.s32.totalorder %s356, %s357
    %p369 = scmp.eq.s32.totalorder %s32, 1
    %p370 = por %p368, %p369
    %p372 = scmp.ne.s32.totalorder %s357, %s371
    %p373 = scmp.eq.s32.totalorder %s32, 0
    %p374 = por %p372, %p373
    %s376 = sadd.s32 %s375, 1
    %p379 = scmp.eq.s32.totalorder %s26, 1
    %p380 = scmp.ne.s32.totalorder %s375, %s377
    %p381 = scmp.eq.s32.totalorder %s26, 0
    %p382 = por %p380, %p381
    %p383 = scmp.ne.s32.totalorder %s375, %s377
    %p384 = scmp.eq.s32.totalorder %s31, 1
    %p385 = por %p383, %p384
    %p386 = scmp.ne.s32.totalorder %s377, %s378
    %p387 = scmp.eq.s32.totalorder %s31, 0
    %p388 = por %p386, %p387
    %p389 = scmp.ne.s32.totalorder %s377, %s378
    %p390 = scmp.eq.s32.totalorder %s32, 1
    %p391 = por %p389, %p390
    %p393 = scmp.ne.s32.totalorder %s378, %s392
    %p394 = scmp.eq.s32.totalorder %s32, 0
    %p395 = por %p393, %p394
    %s397 = sadd.s32 %s396, 1
    %p400 = scmp.eq.s32.totalorder %s26, 1
    %p401 = scmp.ne.s32.totalorder %s396, %s398
    %p402 = scmp.eq.s32.totalorder %s26, 0
    %p403 = por %p401, %p402
    %p404 = scmp.ne.s32.totalorder %s396, %s398
    %p405 = scmp.eq.s32.totalorder %s31, 1
    %p406 = por %p404, %p405
    %p407 = scmp.ne.s32.totalorder %s398, %s399
    %p408 = scmp.eq.s32.totalorder %s31, 0
    %p409 = por %p407, %p408
    %p410 = scmp.ne.s32.totalorder %s398, %s399
    %p411 = scmp.eq.s32.totalorder %s32, 1
    %p412 = por %p410, %p411
    %p414 = scmp.ne.s32.totalorder %s399, %s413
    %p415 = scmp.eq.s32.totalorder %s32, 0
    %p416 = por %p414, %p415
    %s417 = ssub.s32 %s26, %s33
    %p418 = scmp.eq.s32.totalorder %s417, 0
    %s420 = sadd.s32 %s419, 1
    %s421 = scalar_select %p418, %s419, %s420
    %p424 = pneg %p418
    %p425 = scmp.eq.s32.totalorder %s26, 1
    %p426 = por %p424, %p425
    %p427 = scmp.ne.s32.totalorder %s419, %s422
    %p428 = scmp.eq.s32.totalorder %s26, 0
    %p429 = por %p427, %p428
    %p430 = scmp.ne.s32.totalorder %s419, %s422
    %p431 = scmp.eq.s32.totalorder %s31, 1
    %p432 = por %p430, %p431
    %p433 = scmp.ne.s32.totalorder %s422, %s423
    %p434 = scmp.eq.s32.totalorder %s31, 0
    %p435 = por %p433, %p434
    %p436 = scmp.ne.s32.totalorder %s422, %s423
    %p437 = scmp.eq.s32.totalorder %s32, 1
    %p438 = por %p436, %p437
    %p440 = scmp.ne.s32.totalorder %s423, %s439
    %p441 = scmp.eq.s32.totalorder %s32, 0
    %p442 = por %p440, %p441
    %s443 = ssub.s32 %s26, %s33
    %p444 = scmp.eq.s32.totalorder %s443, 0
    %s446 = sadd.s32 %s445, 1
    %s447 = scalar_select %p444, %s445, %s446
    %p450 = pneg %p444
    %p451 = scmp.eq.s32.totalorder %s26, 1
    %p452 = por %p450, %p451
    %p453 = scmp.ne.s32.totalorder %s445, %s448
    %p454 = scmp.eq.s32.totalorder %s26, 0
    %p455 = por %p453, %p454
    %p456 = scmp.ne.s32.totalorder %s445, %s448
    %p457 = scmp.eq.s32.totalorder %s31, 1
    %p458 = por %p456, %p457
    %p459 = scmp.ne.s32.totalorder %s448, %s449
    %p460 = scmp.eq.s32.totalorder %s31, 0
    %p461 = por %p459, %p460
    %p462 = scmp.ne.s32.totalorder %s448, %s449
    %p463 = scmp.eq.s32.totalorder %s32, 1
    %p464 = por %p462, %p463
    %p466 = scmp.ne.s32.totalorder %s449, %s465
    %p467 = scmp.eq.s32.totalorder %s32, 0
    %p468 = por %p466, %p467
    %p469 = scmp.le.s32.totalorder 1, %s26
    %p470 = scmp.lt.s32.totalorder %s26, 3
    %p471 = pnand %p469, %p470
    %p472 = pneg %p471
    // Predicated region
    $region9: #{encoder_forward.1} parent=5 // pred_check
      _
    $region10: #{encoder_forward.1} parent=5 // pred_check_branch
      %474 = sbr.rel (%p471) target = $region12
    $region11: #{encoder_forward.1} parent=5 // pred_region
      %s475 = ssub.s32 %s26, 1
      // Predicated region
      $region13: #{encoder_forward.1} parent=11 // pred_check
        %p476 = pneg %p73
      $region14: #{encoder_forward.1} parent=11 // pred_check_branch
        %478 = sbr.rel (%p476) target = $region16
      $region15: #{encoder_forward.1} parent=11 // pred_region
        _
      $region16: #{encoder_forward.1} parent=11 // pred_fallthru
        _
      // Predicated region
      $region17: #{encoder_forward.1} parent=11 // pred_check
        %p479 = pneg %p94
      $region18: #{encoder_forward.1} parent=11 // pred_check_branch
        %481 = sbr.rel (%p479) target = $region20
      $region19: #{encoder_forward.1} parent=11 // pred_region
        _
      $region20: #{encoder_forward.1} parent=11 // pred_fallthru
        _
      // Predicated region
      $region21: #{encoder_forward.1} parent=11 // pred_check
        %p482 = pneg %p115
      $region22: #{encoder_forward.1} parent=11 // pred_check_branch
        %484 = sbr.rel (%p482) target = $region24
      $region23: #{encoder_forward.1} parent=11 // pred_region
        _
      $region24: #{encoder_forward.1} parent=11 // pred_fallthru
        _
      // Predicated region
      $region25: #{encoder_forward.1} parent=11 // pred_check
        %p485 = pneg %p136
      $region26: #{encoder_forward.1} parent=11 // pred_check_branch
        %487 = sbr.rel (%p485) target = $region28
      $region27: #{encoder_forward.1} parent=11 // pred_region
        _
      $region28: #{encoder_forward.1} parent=11 // pred_fallthru
        _
      // Predicated region
      $region29: #{encoder_forward.1} parent=11 // pred_check
        %p488 = pneg %p157
      $region30: #{encoder_forward.1} parent=11 // pred_check_branch
        %490 = sbr.rel (%p488) target = $region32
      $region31: #{encoder_forward.1} parent=11 // pred_region
        _
      $region32: #{encoder_forward.1} parent=11 // pred_fallthru
        _
      // Predicated region
      $region33: #{encoder_forward.1} parent=11 // pred_check
        %p491 = pneg %p178
      $region34: #{encoder_forward.1} parent=11 // pred_check_branch
        %493 = sbr.rel (%p491) target = $region36
      $region35: #{encoder_forward.1} parent=11 // pred_region
        _
      $region36: #{encoder_forward.1} parent=11 // pred_fallthru
        _
      // Predicated region
      $region37: #{encoder_forward.1} parent=11 // pred_check
        %p494 = pneg %p199
      $region38: #{encoder_forward.1} parent=11 // pred_check_branch
        %496 = sbr.rel (%p494) target = $region40
      $region39: #{encoder_forward.1} parent=11 // pred_region
        _
      $region40: #{encoder_forward.1} parent=11 // pred_fallthru
        _
      // Predicated region
      $region41: #{encoder_forward.1} parent=11 // pred_check
        %p497 = pneg %p220
      $region42: #{encoder_forward.1} parent=11 // pred_check_branch
        %499 = sbr.rel (%p497) target = $region44
      $region43: #{encoder_forward.1} parent=11 // pred_region
        _
      $region44: #{encoder_forward.1} parent=11 // pred_fallthru
        _
      // Predicated region
      $region45: #{encoder_forward.1} parent=11 // pred_check
        %p500 = pneg %p241
      $region46: #{encoder_forward.1} parent=11 // pred_check_branch
        %502 = sbr.rel (%p500) target = $region48
      $region47: #{encoder_forward.1} parent=11 // pred_region
        _
      $region48: #{encoder_forward.1} parent=11 // pred_fallthru
        _
      // Predicated region
      $region49: #{encoder_forward.1} parent=11 // pred_check
        %p503 = pneg %p262
      $region50: #{encoder_forward.1} parent=11 // pred_check_branch
        %505 = sbr.rel (%p503) target = $region52
      $region51: #{encoder_forward.1} parent=11 // pred_region
        _
      $region52: #{encoder_forward.1} parent=11 // pred_fallthru
        _
      // Predicated region
      $region53: #{encoder_forward.1} parent=11 // pred_check
        %p506 = pneg %p283
      $region54: #{encoder_forward.1} parent=11 // pred_check_branch
        %508 = sbr.rel (%p506) target = $region56
      $region55: #{encoder_forward.1} parent=11 // pred_region
        _
      $region56: #{encoder_forward.1} parent=11 // pred_fallthru
        _
      // Predicated region
      $region57: #{encoder_forward.1} parent=11 // pred_check
        %p509 = pneg %p304
      $region58: #{encoder_forward.1} parent=11 // pred_check_branch
        %511 = sbr.rel (%p509) target = $region60
      $region59: #{encoder_forward.1} parent=11 // pred_region
        _
      $region60: #{encoder_forward.1} parent=11 // pred_fallthru
        _
      // Predicated region
      $region61: #{encoder_forward.1} parent=11 // pred_check
        %p512 = pneg %p325
      $region62: #{encoder_forward.1} parent=11 // pred_check_branch
        %514 = sbr.rel (%p512) target = $region64
      $region63: #{encoder_forward.1} parent=11 // pred_region
        _
      $region64: #{encoder_forward.1} parent=11 // pred_fallthru
        _
      // Predicated region
      $region65: #{encoder_forward.1} parent=11 // pred_check
        %p515 = pneg %p346
      $region66: #{encoder_forward.1} parent=11 // pred_check_branch
        %517 = sbr.rel (%p515) target = $region68
      $region67: #{encoder_forward.1} parent=11 // pred_region
        _
      $region68: #{encoder_forward.1} parent=11 // pred_fallthru
        _
      // Predicated region
      $region69: #{encoder_forward.1} parent=11 // pred_check
        %p518 = pneg %p367
      $region70: #{encoder_forward.1} parent=11 // pred_check_branch
        %520 = sbr.rel (%p518) target = $region72
      $region71: #{encoder_forward.1} parent=11 // pred_region
        _
      $region72: #{encoder_forward.1} parent=11 // pred_fallthru
        _
      // Predicated region
      $region73: #{encoder_forward.1} parent=11 // pred_check
        %p521 = pneg %p388
      $region74: #{encoder_forward.1} parent=11 // pred_check_branch
        %523 = sbr.rel (%p521) target = $region76
      $region75: #{encoder_forward.1} parent=11 // pred_region
        _
      $region76: #{encoder_forward.1} parent=11 // pred_fallthru
        _
      // Predicated region
      $region77: #{encoder_forward.1} parent=11 // pred_check
        %p524 = pneg %p409
      $region78: #{encoder_forward.1} parent=11 // pred_check_branch
        %526 = sbr.rel (%p524) target = $region80
      $region79: #{encoder_forward.1} parent=11 // pred_region
        _
      $region80: #{encoder_forward.1} parent=11 // pred_fallthru
        _
    $region12: #{encoder_forward.1} parent=5 // pred_fallthru
      _
    %p527 = scmp.lt.s32.totalorder %s26, 2
    // Predicated region
    $region81: #{encoder_forward.1} parent=5 // pred_check
      %p528 = pneg %p527
    $region82: #{encoder_forward.1} parent=5 // pred_check_branch
      %530 = sbr.rel (%p528) target = $region84
    $region83: #{encoder_forward.1} parent=5 // pred_region
      // Predicated region
      $region85: #{encoder_forward.1} parent=83 // pred_check
        %p531 = pneg %p46
      $region86: #{encoder_forward.1} parent=83 // pred_check_branch
        %533 = sbr.rel (%p531) target = $region88
      $region87: #{encoder_forward.1} parent=83 // pred_region
        %p534 = scmp.lt.s32.totalorder %s26, 1
        %s535 = scalar_select %p534, %s26, 1
        %s536 = smul.addr %s535, 3
        %s537 = smul.addr %s536, 4
        %s538 = scalar_lea.vmem %s0, %s537
      $region88: #{encoder_forward.1} parent=83 // pred_fallthru
        _
    $region84: #{encoder_forward.1} parent=5 // pred_fallthru
      _
    %p539 = scmp.le.s32.totalorder 1, %s26
    %p540 = scmp.lt.s32.totalorder %s26, 3
    %p541 = pnand %p539, %p540
    %p542 = pneg %p541
    // Predicated region
    $region89: #{encoder_forward.1} parent=5 // pred_check
      _
    $region90: #{encoder_forward.1} parent=5 // pred_check_branch
      %544 = sbr.rel (%p541) target = $region92
    $region91: #{encoder_forward.1} parent=5 // pred_region
      %s545 = ssub.s32 %s26, 1
      %p546 = scmp.lt.s32.totalorder %s31, 1
      %s547 = scalar_select %p546, %s31, 1
      %s548 = smul.addr %s547, 3
      %s549 = smul.addr %s548, 4
      %s550 = scalar_lea.vmem %s0, %s549
      %p551 = pneg %p52
      %p552 = pneg %p49
      %p553 = pneg %p73
      %p554 = pneg %p70
      %p555 = pneg %p94
      %p556 = pneg %p91
      %p557 = pneg %p115
      %p558 = pneg %p112
      %p559 = pneg %p136
      %p560 = pneg %p133
      %p561 = pneg %p157
      %p562 = pneg %p154
      %p563 = pneg %p178
      %p564 = pneg %p175
      %p565 = pneg %p199
      %p566 = pneg %p196
      %p567 = pneg %p220
      %p568 = pneg %p217
      %p569 = pneg %p241
      %p570 = pneg %p238
      %p571 = pneg %p262
      %p572 = pneg %p259
      %p573 = pneg %p283
      %p574 = pneg %p280
      %p575 = pneg %p304
      %p576 = pneg %p301
      %p577 = pneg %p325
      %p578 = pneg %p322
      %p579 = pneg %p346
      %p580 = pneg %p343
      %p581 = pneg %p367
      %p582 = pneg %p364
      %p583 = pneg %p388
      %p584 = pneg %p385
      %p585 = pneg %p409
      %p586 = pneg %p406
      %p587 = pneg %p435
      %p588 = pneg %p432
      %p589 = scmp.lt.s32.totalorder %s31, 1
      %s590 = scalar_select %p589, %s31, 1
      %s591 = smul.addr %s590, 3
      %s592 = smul.addr %s591, 8
      %s593 = scalar_lea.vmem %s18, %s592
      %p594 = pneg %p461
      %p595 = pneg %p458
      %p596 = scmp.lt.s32.totalorder %s31, 1
      %s597 = scalar_select %p596, %s31, 1
      %s598 = smul.addr %s597, 4
      %s599 = smul.addr %s598, 8
      %s600 = scalar_lea.vmem %s19, %s599
      %p601 = scmp.lt.s32.totalorder %s31, 1
      %s602 = scalar_select %p601, %s31, 1
      %s603 = smul.addr %s602, 3
      %s604 = smul.addr %s603, 4
      %s605 = scalar_lea.vmem %s0, %s604
      %p606 = scmp.lt.s32.totalorder %s31, 1
      %s607 = scalar_select %p606, %s31, 1
      %s608 = smul.addr %s607, 3
      %s609 = smul.addr %s608, 8
      %s610 = scalar_lea.vmem %s18, %s609
      %p611 = scmp.lt.s32.totalorder %s31, 1
      %s612 = scalar_select %p611, %s31, 1
      %s613 = smul.addr %s612, 4
      %s614 = smul.addr %s613, 8
      %s615 = scalar_lea.vmem %s19, %s614
      %v617 = vld [vmem:[%s605] sm:$0xff]
      %v618 = vld [vmem:[%s605 + $0x8] sm:$0xf]
      %v621 = vunpack.c.l.b16 %v617
      %v622 = vunpack.c.h.b16 %v617
      %v623 = vunpack.c.l.b16 %v618
      %v624 = vpack.c.b16 %v621, %v621
      %v625 = vpack.c.b16 %v622, %v622
      %v626 = vpack.c.b16 %v623, %v623
      %627 = vrot.lane.b32.xlu0 %v624, 127
      %v628 = vpop.permute.xlu0 %627
      %629 = vrot.lane.b32.xlu0 %v625, 127
      %v630 = vpop.permute.xlu0 %629
      %631 = vrot.lane.b32.xlu0 %v626, 127
      %v632 = vpop.permute.xlu0 %631
      %vm633 = vcmask 1039360
      %v634 = vsel %vm633, %v628, %v630
      %v635 = vsel %vm633, %v630, %v632
      %636 = vrot.lane.b32.xlu0 %v624, 126
      %v637 = vpop.permute.xlu0 %636
      %638 = vrot.lane.b32.xlu0 %v625, 126
      %v639 = vpop.permute.xlu0 %638
      %640 = vrot.lane.b32.xlu0 %v626, 126
      %v641 = vpop.permute.xlu0 %640
      %vm642 = vcmask 1031168
      %v643 = vsel %vm642, %v637, %v639
      %v644 = vsel %vm642, %v639, %v641
      %645 = vrot.lane.b32.xlu0 %v624, 110
      %v646 = vpop.permute.xlu0 %645
      %647 = vrot.lane.b32.xlu0 %v625, 110
      %v648 = vpop.permute.xlu0 %647
      %649 = vrot.lane.b32.xlu0 %v626, 110
      %v650 = vpop.permute.xlu0 %649
      %vm651 = vcmask 900096
      %v652 = vsel %vm651, %v646, %v648
      %v653 = vsel %vm651, %v648, %v650
      %654 = vrot.lane.b32.xlu0 %v624, 109
      %v655 = vpop.permute.xlu0 %654
      %656 = vrot.lane.b32.xlu0 %v625, 109
      %v657 = vpop.permute.xlu0 %656
      %658 = vrot.lane.b32.xlu0 %v626, 109
      %v659 = vpop.permute.xlu0 %658
      %vm660 = vcmask 891904
      %v661 = vsel %vm660, %v655, %v657
      %v662 = vsel %vm660, %v657, %v659
      %663 = vrot.lane.b32.xlu0 %v624, 108
      %v664 = vpop.permute.xlu0 %663
      %665 = vrot.lane.b32.xlu0 %v625, 108
      %v666 = vpop.permute.xlu0 %665
      %667 = vrot.lane.b32.xlu0 %v626, 108
      %v668 = vpop.permute.xlu0 %667
      %vm669 = vcmask 883712
      %v670 = vsel %vm669, %v664, %v666
      %v671 = vsel %vm669, %v666, %v668
      %672 = vrot.lane.b32.xlu0 %v624, 92
      %v673 = vpop.permute.xlu0 %672
      %674 = vrot.lane.b32.xlu0 %v625, 92
      %v675 = vpop.permute.xlu0 %674
      %676 = vrot.lane.b32.xlu0 %v626, 92
      %v677 = vpop.permute.xlu0 %676
      %vm678 = vcmask 752640
      %v679 = vsel %vm678, %v673, %v675
      %v680 = vsel %vm678, %v675, %v677
      %681 = vrot.lane.b32.xlu0 %v624, 91
      %v682 = vpop.permute.xlu0 %681
      %683 = vrot.lane.b32.xlu0 %v625, 91
      %v684 = vpop.permute.xlu0 %683
      %685 = vrot.lane.b32.xlu0 %v626, 91
      %v686 = vpop.permute.xlu0 %685
      %vm687 = vcmask 744448
      %v688 = vsel %vm687, %v682, %v684
      %v689 = vsel %vm687, %v684, %v686
      %690 = vrot.lane.b32.xlu0 %v624, 90
      %v691 = vpop.permute.xlu0 %690
      %692 = vrot.lane.b32.xlu0 %v625, 90
      %v693 = vpop.permute.xlu0 %692
      %694 = vrot.lane.b32.xlu0 %v626, 90
      %v695 = vpop.permute.xlu0 %694
      %vm696 = vcmask 736256
      %v697 = vsel %vm696, %v691, %v693
      %v698 = vsel %vm696, %v693, %v695
      %vm699 = vcmask 1043456
      %v702 = vsel %vm699, %v624, %v634
      %v706 = vsel %vm699, %v625, %v635
      %v710 = vsel %vm699, %v626, %v632
      %v714 = vsel %vm699, %v643, %v652
      %v718 = vsel %vm699, %v644, %v653
      %v722 = vsel %vm699, %v641, %v650
      %v726 = vsel %vm699, %v661, %v670
      %v730 = vsel %vm699, %v662, %v671
      %v734 = vsel %vm699, %v659, %v668
      %v738 = vsel %vm699, %v679, %v688
      %v742 = vsel %vm699, %v680, %v689
      %v746 = vsel %vm699, %v677, %v686
      %v748 = vld [vmem:[%s1] sm:$0xf]
      %v749 = vld [vmem:[%s2] sm:$0xff]
      %751 = vset.pattern.permute.xlu0 0
      %752 = vperm.xlu0 %751, %v749
      %v753 = vpop.permute.xlu0 %752
      %vm755 = vcmask 588800
      %v757 = vsel %vm755, %v748, 0
      %v760 = vsel %vm699, %v697, 0
      %v763 = vsel %vm699, %v698, 0
      %v766 = vsel %vm699, %v695, 0
      %768 = vmatprep.subr.bf16.mxu0 %v706
      %769 = vmatpush1.bf16.msra.mxu0 %v702
      %770 = vmatprep.subr.bf16.mxu0 %v718
      %771 = vmatpush1.bf16.msra.mxu0 %v714
      %772 = vmatprep.subr.bf16.mxu0 %v730
      %773 = vmatpush1.bf16.msra.mxu0 %v726
      %774 = vmatprep.subr.bf16.mxu0 %v742
      %775 = vmatpush1.bf16.msra.mxu0 %v738
      %776 = vmatprep.subr.bf16.mxu0 %v763
      %777 = vmatpush1.bf16.msra.mxu0 %v760
      %778 = vmatprep.subr.bf16.mxu0 0
      %779 = vmatpush1.bf16.msra.mxu0 0
      %780 = vmatprep.subr.bf16.mxu0 0
      %781 = vmatpush1.bf16.msra.mxu0 0
      %782 = vmatprep.subr.bf16.mxu0 0
      %783 = vmatpush1.bf16.msra.mxu0 0
      %784 = vmatprep.subr.bf16.mxu0 0
      %785 = vmatpush1.bf16.msra.mxu0 0
      %786 = vmatprep.subr.bf16.mxu0 0
      %787 = vmatpush1.bf16.msra.mxu0 0
      %788 = vmatprep.subr.bf16.mxu0 0
      %789 = vmatpush1.bf16.msra.mxu0 0
      %790 = vmatprep.subr.bf16.mxu0 0
      %791 = vmatpush1.bf16.msra.mxu0 0
      %792 = vmatprep.subr.bf16.mxu0 0
      %793 = vmatpush1.bf16.msra.mxu0 0
      %794 = vmatprep.subr.bf16.mxu0 0
      %795 = vmatpush1.bf16.msra.mxu0 0
      %796 = vmatprep.subr.bf16.mxu0 0
      %797 = vmatpush1.bf16.msra.mxu0 0
      %798 = vmatprep.subr.bf16.mxu0 0
      %799 = vmatpush1.bf16.msra.mxu0 0
      %800 = vmatprep.mubr.bf16.mxu0 0
      %801 = vmatmul.mubr.bf16.gmra.mrb[0].mxu0 %v757
      %v802 = vpop.f32.mrb[0].mxu0
      %v803 = vadd.f32 %v753, %v802
      %v804 = vpop.f32.mrb[0].mxu0
      %v805 = vadd.f32 %v753, %v804
      %v806 = vpop.f32.mrb[0].mxu0
      %v807 = vpop.f32.mrb[0].mxu0
      %808 = vdwg.mxu0
      %809 = vmatprep.subr.bf16.mxu0 0
      %810 = vmatpush1.bf16.msra.mxu0 %v710
      %811 = vmatprep.subr.bf16.mxu0 0
      %812 = vmatpush1.bf16.msra.mxu0 %v722
      %813 = vmatprep.subr.bf16.mxu0 0
      %814 = vmatpush1.bf16.msra.mxu0 %v734
      %815 = vmatprep.subr.bf16.mxu0 0
      %816 = vmatpush1.bf16.msra.mxu0 %v746
      %817 = vmatprep.subr.bf16.mxu0 0
      %818 = vmatpush1.bf16.msra.mxu0 %v766
      %819 = vmatprep.subr.bf16.mxu0 0
      %820 = vmatpush1.bf16.msra.mxu0 0
      %821 = vmatprep.subr.bf16.mxu0 0
      %822 = vmatpush1.bf16.msra.mxu0 0
      %823 = vmatprep.subr.bf16.mxu0 0
      %824 = vmatpush1.bf16.msra.mxu0 0
      %825 = vmatprep.subr.bf16.mxu0 0
      %826 = vmatpush1.bf16.msra.mxu0 0
      %827 = vmatprep.subr.bf16.mxu0 0
      %828 = vmatpush1.bf16.msra.mxu0 0
      %829 = vmatprep.subr.bf16.mxu0 0
      %830 = vmatpush1.bf16.msra.mxu0 0
      %831 = vmatprep.subr.bf16.mxu0 0
      %832 = vmatpush1.bf16.msra.mxu0 0
      %833 = vmatprep.subr.bf16.mxu0 0
      %834 = vmatpush1.bf16.msra.mxu0 0
      %835 = vmatprep.subr.bf16.mxu0 0
      %836 = vmatpush1.bf16.msra.mxu0 0
      %837 = vmatprep.subr.bf16.mxu0 0
      %838 = vmatpush1.bf16.msra.mxu0 0
      %839 = vmatprep.subr.bf16.mxu0 0
      %840 = vmatpush1.bf16.msra.mxu0 0
      %841 = vmatprep.mubr.bf16.mxu0 0
      %842 = vmatmul.mubr.bf16.gmra.mrb[0].mxu0 %v757
      %v843 = vpop.f32.mrb[0].mxu0
      %v844 = vadd.f32 %v753, %v843
      %v845 = vpop.f32.mrb[0].mxu0
      %v846 = vpop.f32.mrb[0].mxu0
      %v847 = vpop.f32.mrb[0].mxu0
      %848 = vdwg.mxu0
      %vm849 = vcmp.ge.f32.partialorder %v803, 0.0
      %vm850 = vcmp.ge.f32.partialorder %v805, 0.0
      %vm851 = vcmp.ge.f32.partialorder %v844, 0.0
      %v852 = vmul.f32 %v803, 0.01
      %v853 = vmul.f32 %v805, 0.01
      %v854 = vmul.f32 %v844, 0.01
      %v855 = vsel %vm849, %v803, %v852
      %v856 = vsel %vm850, %v805, %v853
      %v857 = vsel %vm851, %v844, %v854
      %v858 = vld [vmem:[%s13] sm:$0x7]
      %v860 = vlaneseq
      %v861 = vshrl.u32 %v860, 7
      %v862 = vsub.s32 0, %v861
      %v863 = vrot.slane %v858, %v862
      %v864 = vlaneseq
      %v865 = vshrl.u32 %v864, 7
      %v866 = vsub.s32 1, %v865
      %v867 = vrot.slane %v858, %v866
      %v868 = vlaneseq
      %v869 = vshrl.u32 %v868, 7
      %v870 = vsub.s32 2, %v869
      %v871 = vrot.slane %v858, %v870
      %v875 = vmul.f32 %v855, %v863
      %v876 = vmul.f32 %v856, %v867
      %v877 = vmul.f32 %v857, %v871
      %v878 = vpack.c.bf16 %v875, %v875
      %v879 = vpack.c.bf16 %v876, %v876
      %v880 = vpack.c.bf16 %v877, %v877
      %884 = vrot.lane.b32.xlu0 %v878, 19
      %v885 = vpop.permute.xlu0 %884
      %886 = vrot.lane.b32.xlu0 %v879, 19
      %v887 = vpop.permute.xlu0 %886
      %888 = vrot.lane.b32.xlu0 %v880, 19
      %v889 = vpop.permute.xlu0 %888
      %vm890 = vcmask 154624
      %v891 = vsel %vm890, %v885, %v887
      %v892 = vsel %vm890, %v887, %v889
      %vm893 = vcmask 154624
      %v896 = vsel %vm893, 0, %v885
      %vm897 = vcmask 711680
      %v899 = vsel %vm897, %v892, 0
      %v902 = vrot.slane %v896, 4
      %v903 = vrot.slane %v891, 4
      %v904 = vrot.slane %v899, 4
      %905 = vrot.lane.b32.xlu0 %v902, 127
      %v906 = vpop.permute.xlu0 %905
      %907 = vrot.lane.b32.xlu0 %v903, 127
      %v908 = vpop.permute.xlu0 %907
      %909 = vrot.lane.b32.xlu0 %v904, 127
      %v910 = vpop.permute.xlu0 %909
      %v911 = vsel %vm633, %v906, %v908
      %v912 = vsel %vm633, %v908, %v910
      %913 = vrot.lane.b32.xlu0 %v896, 126
      %v914 = vpop.permute.xlu0 %913
      %915 = vrot.lane.b32.xlu0 %v891, 126
      %v916 = vpop.permute.xlu0 %915
      %917 = vrot.lane.b32.xlu0 %v899, 126
      %v918 = vpop.permute.xlu0 %917
      %v919 = vsel %vm642, %v914, %v916
      %v920 = vsel %vm642, %v916, %v918
      %921 = vrot.lane.b32.xlu0 %v902, 110
      %v922 = vpop.permute.xlu0 %921
      %923 = vrot.lane.b32.xlu0 %v903, 110
      %v924 = vpop.permute.xlu0 %923
      %925 = vrot.lane.b32.xlu0 %v904, 110
      %v926 = vpop.permute.xlu0 %925
      %v927 = vsel %vm651, %v922, %v924
      %v928 = vsel %vm651, %v924, %v926
      %929 = vrot.lane.b32.xlu0 %v896, 109
      %v930 = vpop.permute.xlu0 %929
      %931 = vrot.lane.b32.xlu0 %v891, 109
      %v932 = vpop.permute.xlu0 %931
      %933 = vrot.lane.b32.xlu0 %v899, 109
      %v934 = vpop.permute.xlu0 %933
      %v935 = vsel %vm660, %v930, %v932
      %v936 = vsel %vm660, %v932, %v934
      %937 = vrot.lane.b32.xlu0 %v902, 108
      %v938 = vpop.permute.xlu0 %937
      %939 = vrot.lane.b32.xlu0 %v903, 108
      %v940 = vpop.permute.xlu0 %939
      %941 = vrot.lane.b32.xlu0 %v904, 108
      %v942 = vpop.permute.xlu0 %941
      %v943 = vsel %vm669, %v938, %v940
      %v944 = vsel %vm669, %v940, %v942
      %945 = vrot.lane.b32.xlu0 %v896, 92
      %v946 = vpop.permute.xlu0 %945
      %947 = vrot.lane.b32.xlu0 %v891, 92
      %v948 = vpop.permute.xlu0 %947
      %949 = vrot.lane.b32.xlu0 %v899, 92
      %v950 = vpop.permute.xlu0 %949
      %v951 = vsel %vm678, %v946, %v948
      %v952 = vsel %vm678, %v948, %v950
      %953 = vrot.lane.b32.xlu0 %v902, 91
      %v954 = vpop.permute.xlu0 %953
      %955 = vrot.lane.b32.xlu0 %v903, 91
      %v956 = vpop.permute.xlu0 %955
      %957 = vrot.lane.b32.xlu0 %v904, 91
      %v958 = vpop.permute.xlu0 %957
      %v959 = vsel %vm687, %v954, %v956
      %v960 = vsel %vm687, %v956, %v958
      %961 = vrot.lane.b32.xlu0 %v896, 90
      %v962 = vpop.permute.xlu0 %961
      %963 = vrot.lane.b32.xlu0 %v891, 90
      %v964 = vpop.permute.xlu0 %963
      %965 = vrot.lane.b32.xlu0 %v899, 90
      %v966 = vpop.permute.xlu0 %965
      %v967 = vsel %vm696, %v962, %v964
      %v968 = vsel %vm696, %v964, %v966
      %v970 = vsel %vm699, %v896, %v911
      %v974 = vsel %vm699, %v891, %v912
      %v977 = vsel %vm699, %v899, %v910
      %v981 = vsel %vm699, %v919, %v927
      %v985 = vsel %vm699, %v920, %v928
      %v989 = vsel %vm699, %v918, %v926
      %v993 = vsel %vm699, %v935, %v943
      %v997 = vsel %vm699, %v936, %v944
      %v1001 = vsel %vm699, %v934, %v942
      %v1005 = vsel %vm699, %v951, %v959
      %v1009 = vsel %vm699, %v952, %v960
      %v1013 = vsel %vm699, %v950, %v958
      %v1015 = vld [vmem:[%s3] sm:$0xf]
      %v1016 = vld [vmem:[%s4] sm:$0xff]
      %1018 = vset.pattern.permute.xlu0 0
      %1019 = vperm.xlu0 %1018, %v1016
      %v1020 = vpop.permute.xlu0 %1019
      %v1023 = vsel %vm755, %v1015, 0
      %v1026 = vsel %vm699, %v967, 0
      %v1029 = vsel %vm699, %v968, 0
      %v1032 = vsel %vm699, %v966, 0
      %1034 = vmatprep.subr.bf16.mxu0 %v974
      %1035 = vmatpush1.bf16.msra.mxu0 %v970
      %1036 = vmatprep.subr.bf16.mxu0 %v985
      %1037 = vmatpush1.bf16.msra.mxu0 %v981
      %1038 = vmatprep.subr.bf16.mxu0 %v997
      %1039 = vmatpush1.bf16.msra.mxu0 %v993
      %1040 = vmatprep.subr.bf16.mxu0 %v1009
      %1041 = vmatpush1.bf16.msra.mxu0 %v1005
      %1042 = vmatprep.subr.bf16.mxu0 %v1029
      %1043 = vmatpush1.bf16.msra.mxu0 %v1026
      %1044 = vmatprep.subr.bf16.mxu0 0
      %1045 = vmatpush1.bf16.msra.mxu0 0
      %1046 = vmatprep.subr.bf16.mxu0 0
      %1047 = vmatpush1.bf16.msra.mxu0 0
      %1048 = vmatprep.subr.bf16.mxu0 0
      %1049 = vmatpush1.bf16.msra.mxu0 0
      %1050 = vmatprep.subr.bf16.mxu0 0
      %1051 = vmatpush1.bf16.msra.mxu0 0
      %1052 = vmatprep.subr.bf16.mxu0 0
      %1053 = vmatpush1.bf16.msra.mxu0 0
      %1054 = vmatprep.subr.bf16.mxu0 0
      %1055 = vmatpush1.bf16.msra.mxu0 0
      %1056 = vmatprep.subr.bf16.mxu0 0
      %1057 = vmatpush1.bf16.msra.mxu0 0
      %1058 = vmatprep.subr.bf16.mxu0 0
      %1059 = vmatpush1.bf16.msra.mxu0 0
      %1060 = vmatprep.subr.bf16.mxu0 0
      %1061 = vmatpush1.bf16.msra.mxu0 0
      %1062 = vmatprep.subr.bf16.mxu0 0
      %1063 = vmatpush1.bf16.msra.mxu0 0
      %1064 = vmatprep.subr.bf16.mxu0 0
      %1065 = vmatpush1.bf16.msra.mxu0 0
      %1066 = vmatprep.mubr.bf16.mxu0 0
      %1067 = vmatmul.mubr.bf16.gmra.mrb[0].mxu0 %v1023
      %v1068 = vpop.f32.mrb[0].mxu0
      %v1069 = vadd.f32 %v1020, %v1068
      %v1070 = vpop.f32.mrb[0].mxu0
      %v1071 = vadd.f32 %v1020, %v1070
      %v1072 = vpop.f32.mrb[0].mxu0
      %v1073 = vpop.f32.mrb[0].mxu0
      %1074 = vdwg.mxu0
      %1075 = vmatprep.subr.bf16.mxu0 0
      %1076 = vmatpush1.bf16.msra.mxu0 %v977
      %1077 = vmatprep.subr.bf16.mxu0 0
      %1078 = vmatpush1.bf16.msra.mxu0 %v989
      %1079 = vmatprep.subr.bf16.mxu0 0
      %1080 = vmatpush1.bf16.msra.mxu0 %v1001
      %1081 = vmatprep.subr.bf16.mxu0 0
      %1082 = vmatpush1.bf16.msra.mxu0 %v1013
      %1083 = vmatprep.subr.bf16.mxu0 0
      %1084 = vmatpush1.bf16.msra.mxu0 %v1032
      %1085 = vmatprep.subr.bf16.mxu0 0
      %1086 = vmatpush1.bf16.msra.mxu0 0
      %1087 = vmatprep.subr.bf16.mxu0 0
      %1088 = vmatpush1.bf16.msra.mxu0 0
      %1089 = vmatprep.subr.bf16.mxu0 0
      %1090 = vmatpush1.bf16.msra.mxu0 0
      %1091 = vmatprep.subr.bf16.mxu0 0
      %1092 = vmatpush1.bf16.msra.mxu0 0
      %1093 = vmatprep.subr.bf16.mxu0 0
      %1094 = vmatpush1.bf16.msra.mxu0 0
      %1095 = vmatprep.subr.bf16.mxu0 0
      %1096 = vmatpush1.bf16.msra.mxu0 0
      %1097 = vmatprep.subr.bf16.mxu0 0
      %1098 = vmatpush1.bf16.msra.mxu0 0
      %1099 = vmatprep.subr.bf16.mxu0 0
      %1100 = vmatpush1.bf16.msra.mxu0 0
      %1101 = vmatprep.subr.bf16.mxu0 0
      %1102 = vmatpush1.bf16.msra.mxu0 0
      %1103 = vmatprep.subr.bf16.mxu0 0
      %1104 = vmatpush1.bf16.msra.mxu0 0
      %1105 = vmatprep.subr.bf16.mxu0 0
      %1106 = vmatpush1.bf16.msra.mxu0 0
      %1107 = vmatprep.mubr.bf16.mxu0 0
      %1108 = vmatmul.mubr.bf16.gmra.mrb[0].mxu0 %v1023
      %v1109 = vpop.f32.mrb[0].mxu0
      %v1110 = vadd.f32 %v1020, %v1109
      %v1111 = vpop.f32.mrb[0].mxu0
      %v1112 = vpop.f32.mrb[0].mxu0
      %v1113 = vpop.f32.mrb[0].mxu0
      %1114 = vdwg.mxu0
      %vm1115 = vcmp.ge.f32.partialorder %v1069, 0.0
      %vm1116 = vcmp.ge.f32.partialorder %v1071, 0.0
      %vm1117 = vcmp.ge.f32.partialorder %v1110, 0.0
      %v1118 = vmul.f32 %v1069, 0.01
      %v1119 = vmul.f32 %v1071, 0.01
      %v1120 = vmul.f32 %v1110, 0.01
      %v1121 = vsel %vm1115, %v1069, %v1118
      %v1122 = vsel %vm1116, %v1071, %v1119
      %v1123 = vsel %vm1117, %v1110, %v1120
      %1124 = vst [vmem:[%s610] sm:$0xff] %v1121
      %1125 = vst [vmem:[%s610 + $0x8] sm:$0xff] %v1122
      %vm1126 = vcmask 556032
      %1127 = vst.msk [vmem:[%s610 + $0x10] sm:$0xff] %vm1126, %v1123
      %1131 = vrot.lane.b32.xlu0 %v1121, 127
      %v1132 = vpop.permute.xlu0 %1131
      %1133 = vrot.lane.b32.xlu0 %v1122, 127
      %v1134 = vpop.permute.xlu0 %1133
      %1135 = vrot.lane.b32.xlu0 %v1123, 127
      %v1136 = vpop.permute.xlu0 %1135
      %vm1137 = vcmask 1039360
      %v1138 = vsel %vm1137, %v1132, %v1134
      %v1139 = vsel %vm1137, %v1134, %v1136
      %v1143 = vmax.f32 %v1121, %v1138
      %v1144 = vmax.f32 %v1122, %v1139
      %v1145 = vmax.f32 %v1123, %v1136
      %1149 = vrot.lane.b32.xlu0 %v1143, 110
      %v1150 = vpop.permute.xlu0 %1149
      %1151 = vrot.lane.b32.xlu0 %v1144, 110
      %v1152 = vpop.permute.xlu0 %1151
      %1153 = vrot.lane.b32.xlu0 %v1145, 110
      %v1154 = vpop.permute.xlu0 %1153
      %vm1155 = vcmask 900096
      %v1156 = vsel %vm1155, %v1150, %v1152
      %v1157 = vsel %vm1155, %v1152, %v1154
      %v1161 = vmax.f32 %v1143, %v1156
      %v1162 = vmax.f32 %v1144, %v1157
      %v1163 = vmax.f32 %v1145, %v1154
      %v1164 = vpack.c.bf16 %v1161, %v1161
      %v1165 = vpack.c.bf16 %v1162, %v1162
      %v1166 = vpack.c.bf16 %v1163, %v1163
      %v1167 = vld [vmem:[%s16] sm:$0xf]
      %v1168 = vld [vmem:[%s16 + $0x4] sm:$0xf]
      %v1169 = vld [vmem:[%s16 + $0x8] sm:$0xf]
      %v1170 = vld [vmem:[%s16 + $0xc] sm:$0xf]
      %v1171 = vld [vmem:[%s16 + $0x10] sm:$0xf]
      %v1172 = vld [vmem:[%s16 + $0x14] sm:$0xf]
      %v1173 = vld [vmem:[%s16 + $0x18] sm:$0xf]
      %v1174 = vld [vmem:[%s16 + $0x1c] sm:$0xf]
      %v1175 = vld [vmem:[%s16 + $0x20] sm:$0xf]
      %v1176 = vld [vmem:[%s16 + $0x24] sm:$0xf]
      %v1177 = vld [vmem:[%s16 + $0x28] sm:$0xf]
      %v1178 = vld [vmem:[%s16 + $0x2c] sm:$0xf]
      %v1179 = vld [vmem:[%s16 + $0x30] sm:$0xf]
      %v1180 = vld [vmem:[%s16 + $0x34] sm:$0xf]
      %v1181 = vld [vmem:[%s16 + $0x38] sm:$0xf]
      %v1182 = vld [vmem:[%s16 + $0x3c] sm:$0xf]
      %v1183 = vld [vmem:[%s16 + $0x40] sm:$0xf]
      %v1184 = vld [vmem:[%s16 + $0x44] sm:$0xf]
      %v1185 = vld [vmem:[%s16 + $0x48] sm:$0xf]
      %v1186 = vld [vmem:[%s16 + $0x4c] sm:$0xf]
      %v1187 = vld [vmem:[%s16 + $0x50] sm:$0xf]
      %v1188 = vld [vmem:[%s16 + $0x54] sm:$0xf]
      %v1189 = vld [vmem:[%s16 + $0x58] sm:$0xf]
      %v1190 = vld [vmem:[%s16 + $0x5c] sm:$0xf]
      %v1191 = vld [vmem:[%s16 + $0x60] sm:$0xf]
      %v1192 = vld [vmem:[%s16 + $0x64] sm:$0xf]
      %v1193 = vld [vmem:[%s16 + $0x68] sm:$0xf]
      %v1194 = vld [vmem:[%s16 + $0x6c] sm:$0xf]
      %v1195 = vld [vmem:[%s16 + $0x70] sm:$0xf]
      %v1196 = vld [vmem:[%s16 + $0x74] sm:$0xf]
      %v1197 = vld [vmem:[%s16 + $0x78] sm:$0xf]
      %v1198 = vld [vmem:[%s16 + $0x7c] sm:$0xf]
      %v1199 = vld [vmem:[%s16 + $0x80] sm:$0xf]
      %v1200 = vld [vmem:[%s16 + $0x84] sm:$0xf]
      %v1201 = vld [vmem:[%s16 + $0x88] sm:$0xf]
      %v1202 = vld [vmem:[%s16 + $0x8c] sm:$0xf]
      %v1203 = vld [vmem:[%s16 + $0x90] sm:$0xf]
      %v1204 = vld [vmem:[%s16 + $0x94] sm:$0xf]
      %v1205 = vld [vmem:[%s16 + $0x98] sm:$0x1]
      %v1245 = vunpack.c.l.b16 %v1167
      %v1246 = vunpack.c.l.b16 %v1168
      %v1247 = vunpack.c.l.b16 %v1169
      %v1248 = vunpack.c.l.b16 %v1170
      %v1249 = vunpack.c.l.b16 %v1171
      %v1250 = vunpack.c.l.b16 %v1172
      %v1251 = vunpack.c.l.b16 %v1173
      %v1252 = vunpack.c.l.b16 %v1174
      %v1253 = vunpack.c.l.b16 %v1175
      %v1254 = vunpack.c.l.b16 %v1176
      %v1255 = vunpack.c.l.b16 %v1177
      %v1256 = vunpack.c.l.b16 %v1178
      %v1257 = vunpack.c.l.b16 %v1179
      %v1258 = vunpack.c.l.b16 %v1180
      %v1259 = vunpack.c.l.b16 %v1181
      %v1260 = vunpack.c.l.b16 %v1182
      %v1261 = vunpack.c.l.b16 %v1183
      %v1262 = vunpack.c.l.b16 %v1184
      %v1263 = vunpack.c.l.b16 %v1185
      %v1264 = vunpack.c.l.b16 %v1186
      %v1265 = vunpack.c.l.b16 %v1187
      %v1266 = vunpack.c.l.b16 %v1188
      %v1267 = vunpack.c.l.b16 %v1189
      %v1268 = vunpack.c.l.b16 %v1190
      %v1269 = vunpack.c.l.b16 %v1191
      %v1270 = vunpack.c.l.b16 %v1192
      %v1271 = vunpack.c.l.b16 %v1193
      %v1272 = vunpack.c.l.b16 %v1194
      %v1273 = vunpack.c.l.b16 %v1195
      %v1274 = vunpack.c.l.b16 %v1196
      %v1275 = vunpack.c.l.b16 %v1197
      %v1276 = vunpack.c.l.b16 %v1198
      %v1277 = vunpack.c.l.b16 %v1199
      %v1278 = vunpack.c.l.b16 %v1200
      %v1279 = vunpack.c.l.b16 %v1201
      %v1280 = vunpack.c.l.b16 %v1202
      %v1281 = vunpack.c.l.b16 %v1203
      %v1282 = vunpack.c.l.b16 %v1204
      %v1283 = vunpack.c.l.b16 %v1205
      %v1284 = vpack.c.b16 %v1246, %v1245
      %v1285 = vpack.c.b16 %v1248, %v1247
      %v1286 = vpack.c.b16 %v1250, %v1249
      %v1287 = vpack.c.b16 %v1252, %v1251
      %v1288 = vpack.c.b16 %v1254, %v1253
      %v1289 = vpack.c.b16 %v1256, %v1255
      %v1290 = vpack.c.b16 %v1258, %v1257
      %v1291 = vpack.c.b16 %v1260, %v1259
      %v1292 = vpack.c.b16 %v1262, %v1261
      %v1293 = vpack.c.b16 %v1264, %v1263
      %v1294 = vpack.c.b16 %v1266, %v1265
      %v1295 = vpack.c.b16 %v1268, %v1267
      %v1296 = vpack.c.b16 %v1270, %v1269
      %v1297 = vpack.c.b16 %v1272, %v1271
      %v1298 = vpack.c.b16 %v1274, %v1273
      %v1299 = vpack.c.b16 %v1276, %v1275
      %v1300 = vpack.c.b16 %v1278, %v1277
      %v1301 = vpack.c.b16 %v1280, %v1279
      %v1302 = vpack.c.b16 %v1282, %v1281
      %v1303 = vpack.c.b16 %v1283, %v1283
      %vm1323 = vcmask 400384
      %v1325 = vsel %vm1323, %v1166, 0
      %vm1327 = vcmask 1040384
      %v1328 = vsel 0, 4294967295, 65535
      %v1329 = vsel %vm1327, %v1328, 0
      %v1331 = vand.u32 %v1303, %v1329
      %1333 = vmatprep.subr.bf16.mxu0 0
      %1334 = vmatpush1.bf16.msra.mxu0 %v1284
      %1335 = vmatprep.subr.bf16.mxu0 0
      %1336 = vmatpush1.bf16.msra.mxu0 %v1285
      %1337 = vmatprep.subr.bf16.mxu0 0
      %1338 = vmatpush1.bf16.msra.mxu0 %v1286
      %1339 = vmatprep.subr.bf16.mxu0 0
      %1340 = vmatpush1.bf16.msra.mxu0 %v1287
      %1341 = vmatprep.subr.bf16.mxu0 0
      %1342 = vmatpush1.bf16.msra.mxu0 %v1288
      %1343 = vmatprep.subr.bf16.mxu0 0
      %1344 = vmatpush1.bf16.msra.mxu0 %v1289
      %1345 = vmatprep.subr.bf16.mxu0 0
      %1346 = vmatpush1.bf16.msra.mxu0 %v1290
      %1347 = vmatprep.subr.bf16.mxu0 0
      %1348 = vmatpush1.bf16.msra.mxu0 %v1291
      %1349 = vmatprep.subr.bf16.mxu0 0
      %1350 = vmatpush1.bf16.msra.mxu0 %v1292
      %1351 = vmatprep.subr.bf16.mxu0 0
      %1352 = vmatpush1.bf16.msra.mxu0 %v1293
      %1353 = vmatprep.subr.bf16.mxu0 0
      %1354 = vmatpush1.bf16.msra.mxu0 %v1294
      %1355 = vmatprep.subr.bf16.mxu0 0
      %1356 = vmatpush1.bf16.msra.mxu0 %v1295
      %1357 = vmatprep.subr.bf16.mxu0 0
      %1358 = vmatpush1.bf16.msra.mxu0 %v1296
      %1359 = vmatprep.subr.bf16.mxu0 0
      %1360 = vmatpush1.bf16.msra.mxu0 %v1297
      %1361 = vmatprep.subr.bf16.mxu0 0
      %1362 = vmatpush1.bf16.msra.mxu0 %v1298
      %1363 = vmatprep.subr.bf16.mxu0 0
      %1364 = vmatpush1.bf16.msra.mxu0 %v1299
      %1365 = vmatprep.mubr.bf16.mxu0 %v1165
      %1366 = vmatmul.mubr.bf16.gmra.mrb[0].mxu0 %v1164
      %v1367 = vpop.f32.mrb[0].mxu0
      %v1368 = vadd.f32 0.0, %v1367
      %v1369 = vpop.f32.mrb[0].mxu0
      %v1370 = vpop.f32.mrb[0].mxu0
      %v1371 = vpop.f32.mrb[0].mxu0
      %1372 = vdwg.mxu0
      %1373 = vmatprep.subr.bf16.mxu0 0
      %1374 = vmatpush1.bf16.msra.mxu0 %v1300
      %1375 = vmatprep.subr.bf16.mxu0 0
      %1376 = vmatpush1.bf16.msra.mxu0 %v1301
      %1377 = vmatprep.subr.bf16.mxu0 0
      %1378 = vmatpush1.bf16.msra.mxu0 %v1302
      %1379 = vmatprep.subr.bf16.mxu0 0
      %1380 = vmatpush1.bf16.msra.mxu0 %v1331
      %1381 = vmatprep.subr.bf16.mxu0 0
      %1382 = vmatpush1.bf16.msra.mxu0 0
      %1383 = vmatprep.subr.bf16.mxu0 0
      %1384 = vmatpush1.bf16.msra.mxu0 0
      %1385 = vmatprep.subr.bf16.mxu0 0
      %1386 = vmatpush1.bf16.msra.mxu0 0
      %1387 = vmatprep.subr.bf16.mxu0 0
      %1388 = vmatpush1.bf16.msra.mxu0 0
      %1389 = vmatprep.subr.bf16.mxu0 0
      %1390 = vmatpush1.bf16.msra.mxu0 0
      %1391 = vmatprep.subr.bf16.mxu0 0
      %1392 = vmatpush1.bf16.msra.mxu0 0
      %1393 = vmatprep.subr.bf16.mxu0 0
      %1394 = vmatpush1.bf16.msra.mxu0 0
      %1395 = vmatprep.subr.bf16.mxu0 0
      %1396 = vmatpush1.bf16.msra.mxu0 0
      %1397 = vmatprep.subr.bf16.mxu0 0
      %1398 = vmatpush1.bf16.msra.mxu0 0
      %1399 = vmatprep.subr.bf16.mxu0 0
      %1400 = vmatpush1.bf16.msra.mxu0 0
      %1401 = vmatprep.subr.bf16.mxu0 0
      %1402 = vmatpush1.bf16.msra.mxu0 0
      %1403 = vmatprep.subr.bf16.mxu0 0
      %1404 = vmatpush1.bf16.msra.mxu0 0
      %1405 = vmatprep.mubr.bf16.mxu0 0
      %1406 = vmatmul.mubr.bf16.gmra.mrb[0].mxu0 %v1325
      %v1407 = vpop.f32.mrb[0].mxu0
      %v1408 = vadd.f32 %v1368, %v1407
      %v1409 = vpop.f32.mrb[0].mxu0
      %v1410 = vpop.f32.mrb[0].mxu0
      %v1411 = vpop.f32.mrb[0].mxu0
      %1412 = vdwg.mxu0
      %v1413 = vpack.c.bf16 %v1408, %v1408
      %v1415 = vrot.slane %v1413, 4
      %1416 = vrot.lane.b32.xlu0 %v1415, 127
      %v1417 = vpop.permute.xlu0 %1416
      %1418 = vrot.lane.b32.xlu0 %v1413, 126
      %v1419 = vpop.permute.xlu0 %1418
      %1420 = vrot.lane.b32.xlu0 %v1415, 118
      %v1421 = vpop.permute.xlu0 %1420
      %1422 = vrot.lane.b32.xlu0 %v1413, 117
      %v1423 = vpop.permute.xlu0 %1422
      %1424 = vrot.lane.b32.xlu0 %v1415, 116
      %v1425 = vpop.permute.xlu0 %1424
      %1426 = vrot.lane.b32.xlu0 %v1413, 108
      %v1427 = vpop.permute.xlu0 %1426
      %1428 = vrot.lane.b32.xlu0 %v1415, 107
      %v1429 = vpop.permute.xlu0 %1428
      %1430 = vrot.lane.b32.xlu0 %v1413, 106
      %v1431 = vpop.permute.xlu0 %1430
      %v1434 = vsel %vm699, %v1413, %v1417
      %v1438 = vsel %vm699, %v1419, %v1421
      %v1442 = vsel %vm699, %v1423, %v1425
      %v1446 = vsel %vm699, %v1427, %v1429
      %v1448 = vld [vmem:[%s5] sm:$0xf]
      %v1449 = vld [vmem:[%s5 + $0x4] sm:$0xf]
      %v1450 = vld [vmem:[%s6] sm:$0xff]
      %v1451 = vld [vmem:[%s6 + $0x8] sm:$0xff]
      %1453 = vset.pattern.permute.xlu0 0
      %1454 = vperm.xlu0 %1453, %v1450
      %v1455 = vpop.permute.xlu0 %1454
      %1458 = vset.pattern.permute.xlu0 0
      %1459 = vperm.xlu0 %1458, %v1451
      %v1460 = vpop.permute.xlu0 %1459
      %v1464 = vunpack.c.l.b16 %v1448
      %v1465 = vunpack.c.l.b16 %v1449
      %v1466 = vpack.c.b16 %v1465, %v1464
      %v1468 = vsel %vm755, %v1466, 0
      %v1471 = vsel %vm699, %v1431, 0
      %1473 = vmatprep.subr.bf16.mxu0 0
      %1474 = vmatpush1.bf16.msra.mxu0 %v1434
      %1475 = vmatprep.subr.bf16.mxu0 0
      %1476 = vmatpush1.bf16.msra.mxu0 %v1438
      %1477 = vmatprep.subr.bf16.mxu0 0
      %1478 = vmatpush1.bf16.msra.mxu0 %v1442
      %1479 = vmatprep.subr.bf16.mxu0 0
      %1480 = vmatpush1.bf16.msra.mxu0 %v1446
      %1481 = vmatprep.subr.bf16.mxu0 0
      %1482 = vmatpush1.bf16.msra.mxu0 %v1471
      %1483 = vmatprep.subr.bf16.mxu0 0
      %1484 = vmatpush1.bf16.msra.mxu0 0
      %1485 = vmatprep.subr.bf16.mxu0 0
      %1486 = vmatpush1.bf16.msra.mxu0 0
      %1487 = vmatprep.subr.bf16.mxu0 0
      %1488 = vmatpush1.bf16.msra.mxu0 0
      %1489 = vmatprep.subr.bf16.mxu0 0
      %1490 = vmatpush1.bf16.msra.mxu0 0
      %1491 = vmatprep.subr.bf16.mxu0 0
      %1492 = vmatpush1.bf16.msra.mxu0 0
      %1493 = vmatprep.subr.bf16.mxu0 0
      %1494 = vmatpush1.bf16.msra.mxu0 0
      %1495 = vmatprep.subr.bf16.mxu0 0
      %1496 = vmatpush1.bf16.msra.mxu0 0
      %1497 = vmatprep.subr.bf16.mxu0 0
      %1498 = vmatpush1.bf16.msra.mxu0 0
      %1499 = vmatprep.subr.bf16.mxu0 0
      %1500 = vmatpush1.bf16.msra.mxu0 0
      %1501 = vmatprep.subr.bf16.mxu0 0
      %1502 = vmatpush1.bf16.msra.mxu0 0
      %1503 = vmatprep.subr.bf16.mxu0 0
      %1504 = vmatpush1.bf16.msra.mxu0 0
      %1505 = vmatprep.mubr.bf16.mxu0 0
      %1506 = vmatmul.mubr.bf16.gmra.mrb[0].mxu0 %v1468
      %v1507 = vpop.f32.mrb[0].mxu0
      %v1508 = vadd.f32 %v1455, %v1507
      %v1509 = vpop.f32.mrb[0].mxu0
      %v1510 = vpop.f32.mrb[0].mxu0
      %v1511 = vadd.f32 %v1460, %v1510
      %v1512 = vpop.f32.mrb[0].mxu0
      %1513 = vdwg.mxu0
      %vm1514 = vcmp.ge.f32.partialorder %v1508, 0.0
      %vm1515 = vcmp.ge.f32.partialorder %v1511, 0.0
      %v1516 = vmul.f32 %v1508, 0.01
      %v1517 = vmul.f32 %v1511, 0.01
      %v1518 = vsel %vm1514, %v1508, %v1516
      %v1519 = vsel %vm1515, %v1511, %v1517
      %v1520 = vld [vmem:[%s14] sm:$0x1]
      %v1522 = vlaneseq
      %v1523 = vshrl.u32 %v1522, 7
      %v1524 = vsub.s32 0, %v1523
      %v1525 = vrot.slane %v1520, %v1524
      %v1527 = vmul.f32 %v1518, %v1525
      %v1528 = vmul.f32 %v1519, %v1525
      %v1529 = vpack.c.bf16 %v1528, %v1527
      %1531 = vrot.lane.b32.xlu0 %v1529, 11
      %v1532 = vpop.permute.xlu0 %1531
      %vm1533 = vcmask 89088
      %v1535 = vsel %vm1533, 0, %v1532
      %vm1536 = vcmask 908288
      %v1537 = vsel %vm1536, %v1535, 0
      %1540 = vrot.lane.b32.xlu0 %v1537, 127
      %v1541 = vpop.permute.xlu0 %1540
      %1543 = vrot.lane.b32.xlu0 %v1537, 126
      %v1544 = vpop.permute.xlu0 %1543
      %1546 = vrot.lane.b32.xlu0 %v1537, 118
      %v1547 = vpop.permute.xlu0 %1546
      %1549 = vrot.lane.b32.xlu0 %v1537, 117
      %v1550 = vpop.permute.xlu0 %1549
      %1552 = vrot.lane.b32.xlu0 %v1537, 116
      %v1553 = vpop.permute.xlu0 %1552
      %1555 = vrot.lane.b32.xlu0 %v1537, 108
      %v1556 = vpop.permute.xlu0 %1555
      %1558 = vrot.lane.b32.xlu0 %v1537, 107
      %v1559 = vpop.permute.xlu0 %1558
      %1561 = vrot.lane.b32.xlu0 %v1537, 106
      %v1562 = vpop.permute.xlu0 %1561
      %v1564 = vld [vmem:[%s7] sm:$0xff]
      %v1565 = vld [vmem:[%s7 + $0x8] sm:$0xff]
      %v1566 = vld [vmem:[%s8] sm:$0xff]
      %v1567 = vld [vmem:[%s8 + $0x8] sm:$0xff]
      %1569 = vset.pattern.permute.xlu0 0
      %1570 = vperm.xlu0 %1569, %v1566
      %v1571 = vpop.permute.xlu0 %1570
      %1574 = vset.pattern.permute.xlu0 0
      %1575 = vperm.xlu0 %1574, %v1567
      %v1576 = vpop.permute.xlu0 %1575
      %v1580 = vunpack.c.l.b16 %v1564
      %v1581 = vunpack.c.h.b16 %v1564
      %v1582 = vunpack.c.l.b16 %v1565
      %v1583 = vunpack.c.h.b16 %v1565
      %v1584 = vpack.c.b16 %v1582, %v1580
      %v1585 = vpack.c.b16 %v1583, %v1581
      %vm1587 = vcmask 130048
      %v1589 = vsel %vm1587, %v1585, 0
      %1591 = vmatprep.subr.bf16.mxu0 0
      %1592 = vmatpush1.bf16.msra.mxu0 %v1537
      %1593 = vmatprep.subr.bf16.mxu0 0
      %1594 = vmatpush1.bf16.msra.mxu0 %v1541
      %1595 = vmatprep.subr.bf16.mxu0 0
      %1596 = vmatpush1.bf16.msra.mxu0 %v1544
      %1597 = vmatprep.subr.bf16.mxu0 0
      %1598 = vmatpush1.bf16.msra.mxu0 %v1547
      %1599 = vmatprep.subr.bf16.mxu0 0
      %1600 = vmatpush1.bf16.msra.mxu0 %v1550
      %1601 = vmatprep.subr.bf16.mxu0 0
      %1602 = vmatpush1.bf16.msra.mxu0 %v1553
      %1603 = vmatprep.subr.bf16.mxu0 0
      %1604 = vmatpush1.bf16.msra.mxu0 %v1556
      %1605 = vmatprep.subr.bf16.mxu0 0
      %1606 = vmatpush1.bf16.msra.mxu0 %v1559
      %1607 = vmatprep.subr.bf16.mxu0 0
      %1608 = vmatpush1.bf16.msra.mxu0 %v1562
      %1609 = vmatprep.subr.bf16.mxu0 0
      %1610 = vmatpush1.bf16.msra.mxu0 0
      %1611 = vmatprep.subr.bf16.mxu0 0
      %1612 = vmatpush1.bf16.msra.mxu0 0
      %1613 = vmatprep.subr.bf16.mxu0 0
      %1614 = vmatpush1.bf16.msra.mxu0 0
      %1615 = vmatprep.subr.bf16.mxu0 0
      %1616 = vmatpush1.bf16.msra.mxu0 0
      %1617 = vmatprep.subr.bf16.mxu0 0
      %1618 = vmatpush1.bf16.msra.mxu0 0
      %1619 = vmatprep.subr.bf16.mxu0 0
      %1620 = vmatpush1.bf16.msra.mxu0 0
      %1621 = vmatprep.subr.bf16.mxu0 0
      %1622 = vmatpush1.bf16.msra.mxu0 0
      %1623 = vmatprep.mubr.bf16.mxu0 %v1589
      %1624 = vmatmul.mubr.bf16.gmra.mrb[0].mxu0 %v1584
      %v1625 = vpop.f32.mrb[0].mxu0
      %v1626 = vadd.f32 %v1571, %v1625
      %v1627 = vpop.f32.mrb[0].mxu0
      %v1628 = vpop.f32.mrb[0].mxu0
      %v1629 = vadd.f32 %v1576, %v1628
      %v1630 = vpop.f32.mrb[0].mxu0
      %1631 = vdwg.mxu0
      %vm1632 = vcmp.ge.f32.partialorder %v1626, 0.0
      %vm1633 = vcmp.ge.f32.partialorder %v1629, 0.0
      %v1634 = vmul.f32 %v1626, 0.01
      %v1635 = vmul.f32 %v1629, 0.01
      %v1636 = vsel %vm1632, %v1626, %v1634
      %v1637 = vsel %vm1633, %v1629, %v1635
      %1640 = vrot.lane.b32.xlu0 %v1636, 127
      %v1641 = vpop.permute.xlu0 %1640
      %1642 = vrot.lane.b32.xlu0 %v1637, 127
      %v1643 = vpop.permute.xlu0 %1642
      %v1646 = vmax.f32 %v1636, %v1641
      %v1647 = vmax.f32 %v1637, %v1643
      %1650 = vrot.lane.b32.xlu0 %v1646, 118
      %v1651 = vpop.permute.xlu0 %1650
      %1652 = vrot.lane.b32.xlu0 %v1647, 118
      %v1653 = vpop.permute.xlu0 %1652
      %v1656 = vmax.f32 %v1646, %v1651
      %v1657 = vmax.f32 %v1647, %v1653
      %v1658 = vpack.c.bf16 %v1657, %v1656
      %v1659 = vld [vmem:[%s17] sm:$0xf]
      %v1660 = vld [vmem:[%s17 + $0x4] sm:$0xf]
      %v1661 = vld [vmem:[%s17 + $0x8] sm:$0xf]
      %v1662 = vld [vmem:[%s17 + $0xc] sm:$0xf]
      %v1663 = vld [vmem:[%s17 + $0x10] sm:$0xf]
      %v1664 = vld [vmem:[%s17 + $0x14] sm:$0xf]
      %v1665 = vld [vmem:[%s17 + $0x18] sm:$0xf]
      %v1666 = vld [vmem:[%s17 + $0x1c] sm:$0xf]
      %v1667 = vld [vmem:[%s17 + $0x20] sm:$0xf]
      %v1668 = vld [vmem:[%s17 + $0x24] sm:$0xf]
      %v1669 = vld [vmem:[%s17 + $0x28] sm:$0xf]
      %v1670 = vld [vmem:[%s17 + $0x2c] sm:$0x1]
      %v1683 = vunpack.c.l.b16 %v1659
      %v1684 = vunpack.c.l.b16 %v1660
      %v1685 = vunpack.c.l.b16 %v1661
      %v1686 = vunpack.c.l.b16 %v1662
      %v1687 = vunpack.c.l.b16 %v1663
      %v1688 = vunpack.c.l.b16 %v1664
      %v1689 = vunpack.c.l.b16 %v1665
      %v1690 = vunpack.c.l.b16 %v1666
      %v1691 = vunpack.c.l.b16 %v1667
      %v1692 = vunpack.c.l.b16 %v1668
      %v1693 = vunpack.c.l.b16 %v1669
      %v1694 = vunpack.c.l.b16 %v1670
      %v1695 = vpack.c.b16 %v1684, %v1683
      %v1696 = vpack.c.b16 %v1686, %v1685
      %v1697 = vpack.c.b16 %v1688, %v1687
      %v1698 = vpack.c.b16 %v1690, %v1689
      %v1699 = vpack.c.b16 %v1692, %v1691
      %v1700 = vpack.c.b16 %v1694, %v1693
      %vm1706 = vcmask 728064
      %v1708 = vsel %vm1706, %v1658, 0
      %vm1710 = vcmask 1044480
      %v1711 = vsel %vm699, 4294967295, 65535
      %v1712 = vsel %vm1710, %v1711, 0
      %v1714 = vand.u32 %v1700, %v1712
      %1716 = vmatprep.subr.bf16.mxu0 0
      %1717 = vmatpush1.bf16.msra.mxu0 %v1695
      %1718 = vmatprep.subr.bf16.mxu0 0
      %1719 = vmatpush1.bf16.msra.mxu0 %v1696
      %1720 = vmatprep.subr.bf16.mxu0 0
      %1721 = vmatpush1.bf16.msra.mxu0 %v1697
      %1722 = vmatprep.subr.bf16.mxu0 0
      %1723 = vmatpush1.bf16.msra.mxu0 %v1698
      %1724 = vmatprep.subr.bf16.mxu0 0
      %1725 = vmatpush1.bf16.msra.mxu0 %v1699
      %1726 = vmatprep.subr.bf16.mxu0 0
      %1727 = vmatpush1.bf16.msra.mxu0 %v1714
      %1728 = vmatprep.subr.bf16.mxu0 0
      %1729 = vmatpush1.bf16.msra.mxu0 0
      %1730 = vmatprep.subr.bf16.mxu0 0
      %1731 = vmatpush1.bf16.msra.mxu0 0
      %1732 = vmatprep.subr.bf16.mxu0 0
      %1733 = vmatpush1.bf16.msra.mxu0 0
      %1734 = vmatprep.subr.bf16.mxu0 0
      %1735 = vmatpush1.bf16.msra.mxu0 0
      %1736 = vmatprep.subr.bf16.mxu0 0
      %1737 = vmatpush1.bf16.msra.mxu0 0
      %1738 = vmatprep.subr.bf16.mxu0 0
      %1739 = vmatpush1.bf16.msra.mxu0 0
      %1740 = vmatprep.subr.bf16.mxu0 0
      %1741 = vmatpush1.bf16.msra.mxu0 0
      %1742 = vmatprep.subr.bf16.mxu0 0
      %1743 = vmatpush1.bf16.msra.mxu0 0
      %1744 = vmatprep.subr.bf16.mxu0 0
      %1745 = vmatpush1.bf16.msra.mxu0 0
      %1746 = vmatprep.subr.bf16.mxu0 0
      %1747 = vmatpush1.bf16.msra.mxu0 0
      %1748 = vmatprep.mubr.bf16.mxu0 0
      %1749 = vmatmul.mubr.bf16.gmra.mrb[0].mxu0 %v1708
      %v1750 = vpop.f32.mrb[0].mxu0
      %v1751 = vadd.f32 0.0, %v1750
      %v1752 = vpop.f32.mrb[0].mxu0
      %v1753 = vpop.f32.mrb[0].mxu0
      %v1754 = vadd.f32 0.0, %v1753
      %v1755 = vpop.f32.mrb[0].mxu0
      %1756 = vdwg.mxu0
      %v1757 = vpack.c.bf16 %v1754, %v1751
      %1759 = vrot.lane.b32.xlu0 %v1757, 127
      %v1760 = vpop.permute.xlu0 %1759
      %1762 = vrot.lane.b32.xlu0 %v1757, 126
      %v1763 = vpop.permute.xlu0 %1762
      %1765 = vrot.lane.b32.xlu0 %v1757, 122
      %v1766 = vpop.permute.xlu0 %1765
      %1768 = vrot.lane.b32.xlu0 %v1757, 121
      %v1769 = vpop.permute.xlu0 %1768
      %1771 = vrot.lane.b32.xlu0 %v1757, 120
      %v1772 = vpop.permute.xlu0 %1771
      %1774 = vrot.lane.b32.xlu0 %v1757, 116
      %v1775 = vpop.permute.xlu0 %1774
      %1777 = vrot.lane.b32.xlu0 %v1757, 115
      %v1778 = vpop.permute.xlu0 %1777
      %1780 = vrot.lane.b32.xlu0 %v1757, 114
      %v1781 = vpop.permute.xlu0 %1780
      %v1783 = vld [vmem:[%s9] sm:$0xff]
      %v1784 = vld [vmem:[%s9 + $0x8] sm:$0xff]
      %v1785 = vld [vmem:[%s9 + $0x10] sm:$0xff]
      %v1786 = vld [vmem:[%s9 + $0x18] sm:$0xff]
      %v1787 = vld [vmem:[%s10] sm:$0xff]
      %v1788 = vld [vmem:[%s10 + $0x8] sm:$0xff]
      %v1789 = vld [vmem:[%s10 + $0x10] sm:$0xff]
      %v1790 = vld [vmem:[%s10 + $0x18] sm:$0xff]
      %1792 = vset.pattern.permute.xlu0 0
      %1793 = vperm.xlu0 %1792, %v1787
      %v1794 = vpop.permute.xlu0 %1793
      %1797 = vset.pattern.permute.xlu0 0
      %1798 = vperm.xlu0 %1797, %v1788
      %v1799 = vpop.permute.xlu0 %1798
      %1802 = vset.pattern.permute.xlu0 0
      %1803 = vperm.xlu0 %1802, %v1789
      %v1804 = vpop.permute.xlu0 %1803
      %1807 = vset.pattern.permute.xlu0 0
      %1808 = vperm.xlu0 %1807, %v1790
      %v1809 = vpop.permute.xlu0 %1808
      %v1815 = vunpack.c.l.b16 %v1783
      %v1816 = vunpack.c.h.b16 %v1783
      %v1817 = vunpack.c.l.b16 %v1784
      %v1818 = vunpack.c.h.b16 %v1784
      %v1819 = vunpack.c.l.b16 %v1785
      %v1820 = vunpack.c.h.b16 %v1785
      %v1821 = vunpack.c.l.b16 %v1786
      %v1822 = vunpack.c.h.b16 %v1786
      %v1823 = vpack.c.b16 %v1817, %v1815
      %v1824 = vpack.c.b16 %v1818, %v1816
      %v1825 = vpack.c.b16 %v1821, %v1819
      %v1826 = vpack.c.b16 %v1822, %v1820
      %v1830 = vsel %vm1587, %v1824, 0
      %v1833 = vsel %vm1587, %v1826, 0
      %1835 = vmatprep.subr.bf16.mxu0 0
      %1836 = vmatpush1.bf16.msra.mxu0 %v1757
      %1837 = vmatprep.subr.bf16.mxu0 0
      %1838 = vmatpush1.bf16.msra.mxu0 %v1760
      %1839 = vmatprep.subr.bf16.mxu0 0
      %1840 = vmatpush1.bf16.msra.mxu0 %v1763
      %1841 = vmatprep.subr.bf16.mxu0 0
      %1842 = vmatpush1.bf16.msra.mxu0 %v1766
      %1843 = vmatprep.subr.bf16.mxu0 0
      %1844 = vmatpush1.bf16.msra.mxu0 %v1769
      %1845 = vmatprep.subr.bf16.mxu0 0
      %1846 = vmatpush1.bf16.msra.mxu0 %v1772
      %1847 = vmatprep.subr.bf16.mxu0 0
      %1848 = vmatpush1.bf16.msra.mxu0 %v1775
      %1849 = vmatprep.subr.bf16.mxu0 0
      %1850 = vmatpush1.bf16.msra.mxu0 %v1778
      %1851 = vmatprep.subr.bf16.mxu0 0
      %1852 = vmatpush1.bf16.msra.mxu0 %v1781
      %1853 = vmatprep.subr.bf16.mxu0 0
      %1854 = vmatpush1.bf16.msra.mxu0 0
      %1855 = vmatprep.subr.bf16.mxu0 0
      %1856 = vmatpush1.bf16.msra.mxu0 0
      %1857 = vmatprep.subr.bf16.mxu0 0
      %1858 = vmatpush1.bf16.msra.mxu0 0
      %1859 = vmatprep.subr.bf16.mxu0 0
      %1860 = vmatpush1.bf16.msra.mxu0 0
      %1861 = vmatprep.subr.bf16.mxu0 0
      %1862 = vmatpush1.bf16.msra.mxu0 0
      %1863 = vmatprep.subr.bf16.mxu0 0
      %1864 = vmatpush1.bf16.msra.mxu0 0
      %1865 = vmatprep.subr.bf16.mxu0 0
      %1866 = vmatpush1.bf16.msra.mxu0 0
      %1867 = vmatprep.mubr.bf16.mxu0 %v1830
      %1868 = vmatmul.mubr.bf16.gmra.mrb[0].mxu0 %v1823
      %v1869 = vpop.f32.mrb[0].mxu0
      %v1870 = vadd.f32 %v1794, %v1869
      %v1871 = vpop.f32.mrb[0].mxu0
      %v1872 = vpop.f32.mrb[0].mxu0
      %v1873 = vadd.f32 %v1799, %v1872
      %v1874 = vpop.f32.mrb[0].mxu0
      %1875 = vmatprep.mubr.bf16.mxu0 %v1833
      %1876 = vmatmul.mubr.bf16.gmra.mrb[0].mxu0 %v1825
      %v1877 = vpop.f32.mrb[0].mxu0
      %v1878 = vadd.f32 %v1804, %v1877
      %v1879 = vpop.f32.mrb[0].mxu0
      %v1880 = vpop.f32.mrb[0].mxu0
      %v1881 = vadd.f32 %v1809, %v1880
      %v1882 = vpop.f32.mrb[0].mxu0
      %1883 = vdwg.mxu0
      %vm1884 = vcmp.ge.f32.partialorder %v1870, 0.0
      %vm1885 = vcmp.ge.f32.partialorder %v1873, 0.0
      %vm1886 = vcmp.ge.f32.partialorder %v1878, 0.0
      %vm1887 = vcmp.ge.f32.partialorder %v1881, 0.0
      %v1888 = vmul.f32 %v1870, 0.01
      %v1889 = vmul.f32 %v1873, 0.01
      %v1890 = vmul.f32 %v1878, 0.01
      %v1891 = vmul.f32 %v1881, 0.01
      %v1892 = vsel %vm1884, %v1870, %v1888
      %v1893 = vsel %vm1885, %v1873, %v1889
      %v1894 = vsel %vm1886, %v1878, %v1890
      %v1895 = vsel %vm1887, %v1881, %v1891
      %v1896 = vld [vmem:[%s15] sm:$0x1]
      %v1898 = vlaneseq
      %v1899 = vshrl.u32 %v1898, 7
      %v1900 = vsub.s32 0, %v1899
      %v1901 = vrot.slane %v1896, %v1900
      %v1903 = vmul.f32 %v1892, %v1901
      %v1904 = vmul.f32 %v1893, %v1901
      %v1905 = vmul.f32 %v1894, %v1901
      %v1906 = vmul.f32 %v1895, %v1901
      %v1907 = vpack.c.bf16 %v1904, %v1903
      %v1908 = vpack.c.bf16 %v1906, %v1905
      %1911 = vrot.lane.b32.xlu0 %v1907, 7
      %v1912 = vpop.permute.xlu0 %1911
      %1913 = vrot.lane.b32.xlu0 %v1908, 7
      %v1914 = vpop.permute.xlu0 %1913
      %vm1915 = vcmask 56320
      %v1917 = vsel %vm1915, 0, %v1912
      %v1919 = vsel %vm1915, 0, %v1914
      %vm1920 = vcmask 351232
      %v1921 = vsel %vm1920, %v1917, 0
      %v1923 = vsel %vm1920, %v1919, 0
      %1927 = vrot.lane.b32.xlu0 %v1921, 127
      %v1928 = vpop.permute.xlu0 %1927
      %1929 = vrot.lane.b32.xlu0 %v1923, 127
      %v1930 = vpop.permute.xlu0 %1929
      %1933 = vrot.lane.b32.xlu0 %v1921, 126
      %v1934 = vpop.permute.xlu0 %1933
      %1935 = vrot.lane.b32.xlu0 %v1923, 126
      %v1936 = vpop.permute.xlu0 %1935
      %1939 = vrot.lane.b32.xlu0 %v1921, 122
      %v1940 = vpop.permute.xlu0 %1939
      %1941 = vrot.lane.b32.xlu0 %v1923, 122
      %v1942 = vpop.permute.xlu0 %1941
      %1945 = vrot.lane.b32.xlu0 %v1921, 121
      %v1946 = vpop.permute.xlu0 %1945
      %1947 = vrot.lane.b32.xlu0 %v1923, 121
      %v1948 = vpop.permute.xlu0 %1947
      %1951 = vrot.lane.b32.xlu0 %v1921, 120
      %v1952 = vpop.permute.xlu0 %1951
      %1953 = vrot.lane.b32.xlu0 %v1923, 120
      %v1954 = vpop.permute.xlu0 %1953
      %1957 = vrot.lane.b32.xlu0 %v1921, 116
      %v1958 = vpop.permute.xlu0 %1957
      %1959 = vrot.lane.b32.xlu0 %v1923, 116
      %v1960 = vpop.permute.xlu0 %1959
      %1963 = vrot.lane.b32.xlu0 %v1921, 115
      %v1964 = vpop.permute.xlu0 %1963
      %1965 = vrot.lane.b32.xlu0 %v1923, 115
      %v1966 = vpop.permute.xlu0 %1965
      %1969 = vrot.lane.b32.xlu0 %v1921, 114
      %v1970 = vpop.permute.xlu0 %1969
      %1971 = vrot.lane.b32.xlu0 %v1923, 114
      %v1972 = vpop.permute.xlu0 %1971
      %v1975 = vld [vmem:[%s11] sm:$0xff]
      %v1976 = vld [vmem:[%s11 + $0x8] sm:$0xf]
      %v1977 = vld [vmem:[%s11 + $0xc] sm:$0xff]
      %v1978 = vld [vmem:[%s11 + $0x14] sm:$0xf]
      %v1979 = vld [vmem:[%s12] sm:$0xff]
      %v1980 = vld [vmem:[%s12 + $0x8] sm:$0xff]
      %1982 = vset.pattern.permute.xlu0 0
      %1983 = vperm.xlu0 %1982, %v1979
      %v1984 = vpop.permute.xlu0 %1983
      %1987 = vset.pattern.permute.xlu0 0
      %1988 = vperm.xlu0 %1987, %v1980
      %v1989 = vpop.permute.xlu0 %1988
      %v1995 = vunpack.c.l.b16 %v1975
      %v1996 = vunpack.c.h.b16 %v1975
      %v1997 = vunpack.c.l.b16 %v1976
      %v1998 = vunpack.c.l.b16 %v1977
      %v1999 = vunpack.c.h.b16 %v1977
      %v2000 = vunpack.c.l.b16 %v1978
      %v2001 = vpack.c.b16 %v1998, %v1995
      %v2002 = vpack.c.b16 %v1999, %v1996
      %v2003 = vpack.c.b16 %v2000, %v1997
      %vm2006 = vcmask 261120
      %v2008 = vsel %vm2006, %v2003, 0
      %2010 = vmatprep.subr.bf16.mxu0 0
      %2011 = vmatpush1.bf16.msra.mxu0 %v1921
      %2012 = vmatprep.subr.bf16.mxu0 0
      %2013 = vmatpush1.bf16.msra.mxu0 %v1923
      %2014 = vmatprep.subr.bf16.mxu0 0
      %2015 = vmatpush1.bf16.msra.mxu0 %v1928
      %2016 = vmatprep.subr.bf16.mxu0 0
      %2017 = vmatpush1.bf16.msra.mxu0 %v1930
      %2018 = vmatprep.subr.bf16.mxu0 0
      %2019 = vmatpush1.bf16.msra.mxu0 %v1934
      %2020 = vmatprep.subr.bf16.mxu0 0
      %2021 = vmatpush1.bf16.msra.mxu0 %v1936
      %2022 = vmatprep.subr.bf16.mxu0 0
      %2023 = vmatpush1.bf16.msra.mxu0 %v1940
      %2024 = vmatprep.subr.bf16.mxu0 0
      %2025 = vmatpush1.bf16.msra.mxu0 %v1942
      %2026 = vmatprep.subr.bf16.mxu0 0
      %2027 = vmatpush1.bf16.msra.mxu0 %v1946
      %2028 = vmatprep.subr.bf16.mxu0 0
      %2029 = vmatpush1.bf16.msra.mxu0 %v1948
      %2030 = vmatprep.subr.bf16.mxu0 0
      %2031 = vmatpush1.bf16.msra.mxu0 %v1952
      %2032 = vmatprep.subr.bf16.mxu0 0
      %2033 = vmatpush1.bf16.msra.mxu0 %v1954
      %2034 = vmatprep.subr.bf16.mxu0 0
      %2035 = vmatpush1.bf16.msra.mxu0 %v1958
      %2036 = vmatprep.subr.bf16.mxu0 0
      %2037 = vmatpush1.bf16.msra.mxu0 %v1960
      %2038 = vmatprep.subr.bf16.mxu0 0
      %2039 = vmatpush1.bf16.msra.mxu0 %v1964
      %2040 = vmatprep.subr.bf16.mxu0 0
      %2041 = vmatpush1.bf16.msra.mxu0 %v1966
      %2042 = vmatprep.mubr.bf16.mxu0 %v2002
      %2043 = vmatmul.mubr.bf16.gmra.mrb[0].mxu0 %v2001
      %v2044 = vpop.f32.mrb[0].mxu0
      %v2045 = vadd.f32 %v1984, %v2044
      %v2046 = vpop.f32.mrb[0].mxu0
      %v2047 = vpop.f32.mrb[0].mxu0
      %v2048 = vadd.f32 %v1989, %v2047
      %v2049 = vpop.f32.mrb[0].mxu0
      %2050 = vdwg.mxu0
      %2051 = vmatprep.subr.bf16.mxu0 0
      %2052 = vmatpush1.bf16.msra.mxu0 %v1970
      %2053 = vmatprep.subr.bf16.mxu0 0
      %2054 = vmatpush1.bf16.msra.mxu0 %v1972
      %2055 = vmatprep.subr.bf16.mxu0 0
      %2056 = vmatpush1.bf16.msra.mxu0 0
      %2057 = vmatprep.subr.bf16.mxu0 0
      %2058 = vmatpush1.bf16.msra.mxu0 0
      %2059 = vmatprep.subr.bf16.mxu0 0
      %2060 = vmatpush1.bf16.msra.mxu0 0
      %2061 = vmatprep.subr.bf16.mxu0 0
      %2062 = vmatpush1.bf16.msra.mxu0 0
      %2063 = vmatprep.subr.bf16.mxu0 0
      %2064 = vmatpush1.bf16.msra.mxu0 0
      %2065 = vmatprep.subr.bf16.mxu0 0
      %2066 = vmatpush1.bf16.msra.mxu0 0
      %2067 = vmatprep.subr.bf16.mxu0 0
      %2068 = vmatpush1.bf16.msra.mxu0 0
      %2069 = vmatprep.subr.bf16.mxu0 0
      %2070 = vmatpush1.bf16.msra.mxu0 0
      %2071 = vmatprep.subr.bf16.mxu0 0
      %2072 = vmatpush1.bf16.msra.mxu0 0
      %2073 = vmatprep.subr.bf16.mxu0 0
      %2074 = vmatpush1.bf16.msra.mxu0 0
      %2075 = vmatprep.subr.bf16.mxu0 0
      %2076 = vmatpush1.bf16.msra.mxu0 0
      %2077 = vmatprep.subr.bf16.mxu0 0
      %2078 = vmatpush1.bf16.msra.mxu0 0
      %2079 = vmatprep.subr.bf16.mxu0 0
      %2080 = vmatpush1.bf16.msra.mxu0 0
      %2081 = vmatprep.subr.bf16.mxu0 0
      %2082 = vmatpush1.bf16.msra.mxu0 0
      %2083 = vmatprep.mubr.bf16.mxu0 0
      %2084 = vmatmul.mubr.bf16.gmra.mrb[0].mxu0 %v2008
      %v2085 = vpop.f32.mrb[0].mxu0
      %v2086 = vadd.f32 %v2045, %v2085
      %v2087 = vpop.f32.mrb[0].mxu0
      %v2088 = vpop.f32.mrb[0].mxu0
      %v2089 = vadd.f32 %v2048, %v2088
      %v2090 = vpop.f32.mrb[0].mxu0
      %2091 = vdwg.mxu0
      %vm2092 = vcmp.ge.f32.partialorder %v2086, 0.0
      %vm2093 = vcmp.ge.f32.partialorder %v2089, 0.0
      %v2094 = vmul.f32 %v2086, 0.01
      %v2095 = vmul.f32 %v2089, 0.01
      %v2096 = vsel %vm2092, %v2086, %v2094
      %v2097 = vsel %vm2093, %v2089, %v2095
      %2100 = vrot.lane.b32.xlu0 %v2096, 100
      %v2101 = vpop.permute.xlu0 %2100
      %2102 = vrot.lane.b32.xlu0 %v2097, 100
      %v2103 = vpop.permute.xlu0 %2102
      %vm2106 = vcmask 818176
      %v2107 = vsel %vm2106, %v1636, %v2101
      %v2108 = vsel %vm2106, %v1637, %v2103
      %2109 = vst [vmem:[%s615] sm:$0xff] %v2107
      %vm2110 = vcmask 64512
      %2111 = vst.msk [vmem:[%s615 + $0x8] sm:$0xff] %vm2110, %v2101
      %2112 = vst [vmem:[%s615 + $0x10] sm:$0xff] %v2108
      %2113 = vst.msk [vmem:[%s615 + $0x18] sm:$0xff] %vm2110, %v2103
      %p2114 = scmp.lt.s32.totalorder %s31, 1
      %s2115 = scalar_select %p2114, %s31, 1
      %s2116 = smul.addr %s2115, 3
      %s2117 = smul.addr %s2116, 8
      %s2118 = scalar_lea.vmem %s18, %s2117
      %p2119 = scmp.lt.s32.totalorder %s31, 1
      %s2120 = scalar_select %p2119, %s31, 1
      %s2121 = smul.addr %s2120, 4
      %s2122 = smul.addr %s2121, 8
      %s2123 = scalar_lea.vmem %s19, %s2122
      // Predicated region
      $region93: #{encoder_forward.1} parent=91 // pred_check
        %p2124 = pneg %p432
      $region94: #{encoder_forward.1} parent=91 // pred_check_branch
        %2126 = sbr.rel (%p2124) target = $region96
      $region95: #{encoder_forward.1} parent=91 // pred_region
        _
      $region96: #{encoder_forward.1} parent=91 // pred_fallthru
        _
      // Predicated region
      $region97: #{encoder_forward.1} parent=91 // pred_check
        %p2127 = pneg %p458
      $region98: #{encoder_forward.1} parent=91 // pred_check_branch
        %2129 = sbr.rel (%p2127) target = $region100
      $region99: #{encoder_forward.1} parent=91 // pred_region
        _
      $region100: #{encoder_forward.1} parent=91 // pred_fallthru
        _
    $region92: #{encoder_forward.1} parent=5 // pred_fallthru
      _
    %p2130 = scmp.le.s32.totalorder 2, %s26
    // Predicated region
    $region101: #{encoder_forward.1} parent=5 // pred_check
      %p2131 = pneg %p2130
    $region102: #{encoder_forward.1} parent=5 // pred_check_branch
      %2133 = sbr.rel (%p2131) target = $region104
    $region103: #{encoder_forward.1} parent=5 // pred_region
      %s2134 = ssub.s32 %s26, 2
      // Predicated region
      $region105: #{encoder_forward.1} parent=103 // pred_check
        %p2135 = pneg %p438
      $region106: #{encoder_forward.1} parent=103 // pred_check_branch
        %2137 = sbr.rel (%p2135) target = $region108
      $region107: #{encoder_forward.1} parent=103 // pred_region
        %p2138 = scmp.lt.s32.totalorder %s32, 1
        %s2139 = scalar_select %p2138, %s32, 1
        %s2140 = smul.addr %s2139, 3
        %s2141 = smul.addr %s2140, 8
        %s2142 = scalar_lea.vmem %s18, %s2141
      $region108: #{encoder_forward.1} parent=103 // pred_fallthru
        _
      // Predicated region
      $region109: #{encoder_forward.1} parent=103 // pred_check
        %p2143 = pneg %p464
      $region110: #{encoder_forward.1} parent=103 // pred_check_branch
        %2145 = sbr.rel (%p2143) target = $region112
      $region111: #{encoder_forward.1} parent=103 // pred_region
        %p2146 = scmp.lt.s32.totalorder %s32, 1
        %s2147 = scalar_select %p2146, %s32, 1
        %s2148 = smul.addr %s2147, 4
        %s2149 = smul.addr %s2148, 8
        %s2150 = scalar_lea.vmem %s19, %s2149
      $region112: #{encoder_forward.1} parent=103 // pred_fallthru
        _
    $region104: #{encoder_forward.1} parent=5 // pred_fallthru
      _
  $region6: #{encoder_forward.1} parent=0 // loop_footer
    %s30 = sadd.s32 1, %s26
  $region7: #{encoder_forward.1} parent=0 // loop_footer_branch
    %25 = sbr.rel target = $region3
  $region8: #{encoder_forward.1} parent=0 // loop_exit
    _

</llo_original>
